<compile_context>
chip_gen: v7x
topology: tpu7x:2x2x1
jax: 0.10.0
libtpu: 0.0.40
codegen_flags: <defaults>
</compile_context>

<pallas_src>
import functools

import jax
import jax.numpy as jnp
from jax.experimental import pallas as pl
from jax.experimental.pallas import tpu as pltpu

MXU_DTYPE = jnp.bfloat16     # MXU operand dtype (accumulation stays f32)
ACT_DTYPE = jnp.bfloat16     # HBM storage dtype for inter-kernel activations
BN_EPS = 1e-5


# --------------------------- shared in-kernel helpers ------------------------
def _im2col_conv(xf32, wT_ref, b_ref, H, W):
    """3x3 conv on a flat padded slab xf32: (Cin, (H+3)*(W+2)) f32.

    The 9 taps are pure lane-offset windows of length M = H*(W+2); they are
    concatenated along sublanes into one (9*Cin, M) patch feeding a single
    big-K bf16 MXU matmul.  Columns with (col % (W+2)) >= W are junk and are
    masked by the caller.
    """
    M = H * (W + 2)
    taps = []
    for kh in range(3):
        for kw in range(3):
            s = kh * (W + 2) + kw
            taps.append(xf32[:, s:s + M])
    # TODO(synk): slice/concat the taps directly in bf16 once unaligned packed
    # sublane concat is guaranteed to lower; f32 slices + one patch cast is the
    # known-safe path (HBM traffic is already bf16).
    patch = jnp.concatenate(taps, axis=0).astype(MXU_DTYPE)          # (9*Cin, M)
    acc = jnp.dot(wT_ref[...], patch, preferred_element_type=jnp.float32)
    return acc + b_ref[...]                                          # (Cout, M)


def _stats(acc):
    # per-batch channel [sum, sum-of-squares] for train-mode BatchNorm
    return jnp.concatenate([jnp.sum(acc, axis=1, keepdims=True),
                            jnp.sum(acc * acc, axis=1, keepdims=True)], axis=1)


def _bn_affine(st_ref, g_ref, be_ref, count):
    # st_ref: (N, C, 2) per-batch stats (full array, constant index_map).
    tot = jnp.sum(st_ref[...], axis=0)                                # (C, 2)
    mean = tot[:, 0:1] / count
    var = jnp.maximum(tot[:, 1:2] / count - mean * mean, 0.0)
    scale = g_ref[...] * jax.lax.rsqrt(var + BN_EPS)
    shift = be_ref[...] - mean * scale
    return scale, shift                                               # (C, 1) each


# ------------------ Kernel C1: conv3x3 + BN1 per-batch stats -----------------
def _conv1_kernel(x_ref, wT_ref, b_ref, mask_ref, h_ref, st_ref, *, H, W):
    x = x_ref[0].astype(jnp.float32)                                  # (Cin, Lp)
    acc = _im2col_conv(x, wT_ref, b_ref, H, W) * mask_ref[...]        # zero junk cols
    h_ref[0] = acc.astype(ACT_DTYPE)
    st_ref[0] = _stats(acc)


def conv1_call(xflat, wT, b, mask, *, H, W, n_out_ch):
    N, Cin, Lp = xflat.shape
    M = H * (W + 2)
    return pl.pallas_call(
        functools.partial(_conv1_kernel, H=H, W=W),
        out_shape=(jax.ShapeDtypeStruct((N, n_out_ch, M), ACT_DTYPE),
                   jax.ShapeDtypeStruct((N, n_out_ch, 2), jnp.float32)),
        grid=(N,),
        in_specs=[
            pl.BlockSpec((1, Cin, Lp), lambda n: (n, 0, 0)),
            pl.BlockSpec((n_out_ch, 9 * Cin), lambda n: (0, 0)),
            pl.BlockSpec((n_out_ch, 1), lambda n: (0, 0)),
            pl.BlockSpec((1, M), lambda n: (0, 0)),
        ],
        out_specs=(pl.BlockSpec((1, n_out_ch, M), lambda n: (n, 0, 0)),
                   pl.BlockSpec((1, n_out_ch, 2), lambda n: (n, 0, 0))),
        compiler_params=pltpu.CompilerParams(dimension_semantics=("parallel",)),
    )(xflat, wT, b, mask)


# ----- Kernel C2: BN1+ReLU prologue (in-kernel affine), scratch halo embed, ---
# ----- conv3x3, BN2 per-batch stats ------------------------------------------
def _conv2_kernel(h1_ref, st1_ref, g1_ref, be1_ref, wT_ref, b_ref, mask_ref,
                  h2_ref, st2_ref, pad_scr, *, H, W, count):
    M = H * (W + 2)
    Cmid = pad_scr.shape[0]
    Lp = pad_scr.shape[1]
    # BN1 scale/shift computed in-kernel from conv1's per-batch stats.
    sc1, sh1 = _bn_affine(st1_ref, g1_ref, be1_ref, count)
    # NOTE: the mask multiply after the BN shift is required — it re-zeroes the
    # junk columns that serve as the horizontal halo for conv2.
    a = jnp.maximum(h1_ref[0].astype(jnp.float32) * sc1 + sh1, 0.0) * mask_ref[...]
    # Zero-halo embed via persistent VMEM scratch: only halo bands + interior
    # are written each step (no full-slab concat / zero tensors).
    pad_scr[:, :W + 3] = jnp.zeros((Cmid, W + 3), jnp.float32)
    pad_scr[:, W + 3 + M:] = jnp.zeros((Cmid, Lp - M - (W + 3)), jnp.float32)
    pad_scr[:, W + 3:W + 3 + M] = a
    acc = _im2col_conv(pad_scr[...], wT_ref, b_ref, H, W) * mask_ref[...]
    h2_ref[0] = acc.astype(ACT_DTYPE)
    st2_ref[0] = _stats(acc)


def conv2_call(h1, st1, g1, be1, wT, b, mask, *, H, W, count):
    N, Cmid, M = h1.shape
    Cout = wT.shape[0]
    Lp = (H + 3) * (W + 2)
    return pl.pallas_call(
        functools.partial(_conv2_kernel, H=H, W=W, count=count),
        out_shape=(jax.ShapeDtypeStruct((N, Cout, M), ACT_DTYPE),
                   jax.ShapeDtypeStruct((N, Cout, 2), jnp.float32)),
        grid=(N,),
        in_specs=[
            pl.BlockSpec((1, Cmid, M), lambda n: (n, 0, 0)),
            pl.BlockSpec((N, Cmid, 2), lambda n: (0, 0, 0)),
            pl.BlockSpec((Cmid, 1), lambda n: (0, 0)),
            pl.BlockSpec((Cmid, 1), lambda n: (0, 0)),
            pl.BlockSpec((Cout, 9 * Cmid), lambda n: (0, 0)),
            pl.BlockSpec((Cout, 1), lambda n: (0, 0)),
            pl.BlockSpec((1, M), lambda n: (0, 0)),
        ],
        out_specs=(pl.BlockSpec((1, Cout, M), lambda n: (n, 0, 0)),
                   pl.BlockSpec((1, Cout, 2), lambda n: (n, 0, 0))),
        scratch_shapes=[pltpu.VMEM((Cmid, Lp), jnp.float32)],
        compiler_params=pltpu.CompilerParams(dimension_semantics=("parallel",)),
    )(h1, st1, g1, be1, wT, b, mask)


# --- Kernel F: BN2 + ReLU (in-kernel affine) + lane-dense compaction ---------
def _bn_relu_out_kernel(h2_ref, st2_ref, g2_ref, be2_ref, o_ref,
                        *, H, W, count, c_out):
    sc2, sh2 = _bn_affine(st2_ref, g2_ref, be2_ref, count)
    hv = h2_ref[0].astype(jnp.float32)                                # (Cp, M)
    # Drop junk columns in VMEM -> lane-dense (Cp, H*W) (exact multiple of 128
    # lanes here), so the store is unmasked and no XLA slice pass is needed.
    cols = [hv[:, r * (W + 2): r * (W + 2) + W] for r in range(H)]
    compact = jnp.concatenate(cols, axis=1)                           # (Cp, H*W)
    out = jnp.maximum(compact * sc2 + sh2, 0.0)
    o_ref[0] = out[:c_out]                                            # strip pad ch


def bn_relu_out_call(h2, st2, g2, be2, *, H, W, count, c_out):
    N, Cp, M = h2.shape
    return pl.pallas_call(
        functools.partial(_bn_relu_out_kernel, H=H, W=W, count=count, c_out=c_out),
        out_shape=jax.ShapeDtypeStruct((N, c_out, H * W), jnp.float32),
        grid=(N,),
        in_specs=[
            pl.BlockSpec((1, Cp, M), lambda n: (n, 0, 0)),
            pl.BlockSpec((N, Cp, 2), lambda n: (0, 0, 0)),
            pl.BlockSpec((Cp, 1), lambda n: (0, 0)),
            pl.BlockSpec((Cp, 1), lambda n: (0, 0)),
        ],
        out_specs=pl.BlockSpec((1, c_out, H * W), lambda n: (n, 0, 0)),
        compiler_params=pltpu.CompilerParams(dimension_semantics=("parallel",)),
    )(h2, st2, g2, be2)


# ---------------------------------------------------------------------------
# Full `up` forward pass (NCHW in / NCHW out).
# ---------------------------------------------------------------------------
def _round_up(x, m):
    return -(-x // m) * m


@jax.jit
def up_forward(x1_nchw, x2_nchw, params):
    N, C1, H1, W1 = x1_nchw.shape
    _, C2, H, W = x2_nchw.shape
    M = H * (W + 2)
    Lp = (H + 3) * (W + 2)

    # --- ConvTranspose2d(C1, Ct, 2, stride=2): left to XLA (tiny K=C1 matmul)
    #     so it fuses with the layout pass below; no standalone kernel launch.
    wt = params["up_w"]                                # (in, out, 2, 2)
    Ct = wt.shape[1]
    y = jnp.einsum("nihw,iokl->nohkwl", x1_nchw, wt,
                   precision=jax.lax.Precision.HIGHEST)
    x1u = y.reshape(N, Ct, 2 * H1, 2 * W1) + params["up_b"][None, :, None, None]

    # --- F.pad-to-x2 + channel concat + conv1 halo pad -> channels-first flat
    #     padded slab (N, C, (H+3)*(W+2)), stored bf16 in HBM. ---
    dY, dX = H - 2 * H1, W - 2 * W1                    # 0 for even shapes
    x1u = jnp.pad(x1u, ((0, 0), (0, 0),
                        (dY // 2, dY - dY // 2), (dX // 2, dX - dX // 2)))
    xcat = jnp.concatenate([x2_nchw, x1u], axis=1)     # (N, C, H, W)
    xcat = jnp.pad(xcat, ((0, 0), (0, 0), (1, 2), (1, 1)))
    C = C2 + Ct
    xcat = xcat.reshape(N, C, Lp).astype(ACT_DTYPE)

    # valid-column mask for the flat layout (junk where col % (W+2) >= W)
    mask = (jnp.arange(M) % (W + 2) < W).astype(jnp.float32).reshape(1, M)

    # --- pad Cout up to a sublane multiple so accumulator vregs are full ---
    Cout = params["w1"].shape[0]
    Cop = _round_up(Cout, 8)
    pc = Cop - Cout

    w1T = jnp.transpose(params["w1"], (0, 2, 3, 1)).reshape(Cout, 9 * C)
    w1T = jnp.pad(w1T, ((0, pc), (0, 0))).astype(MXU_DTYPE)
    b1 = jnp.pad(params["b1"], (0, pc)).reshape(Cop, 1).astype(jnp.float32)
    g1 = jnp.pad(params["g1"], (0, pc), constant_values=1.0).reshape(Cop, 1).astype(jnp.float32)
    be1 = jnp.pad(params["be1"], (0, pc)).reshape(Cop, 1).astype(jnp.float32)

    w2p = jnp.pad(params["w2"], ((0, pc), (0, pc), (0, 0), (0, 0)))
    w2T = jnp.transpose(w2p, (0, 2, 3, 1)).reshape(Cop, 9 * Cop).astype(MXU_DTYPE)
    b2 = jnp.pad(params["b2"], (0, pc)).reshape(Cop, 1).astype(jnp.float32)
    g2 = jnp.pad(params["g2"], (0, pc), constant_values=1.0).reshape(Cop, 1).astype(jnp.float32)
    be2 = jnp.pad(params["be2"], (0, pc)).reshape(Cop, 1).astype(jnp.float32)

    count = N * H * W   # BN train-mode (biased) statistics denominator

    # --- conv1 (+ BN1 per-batch stats) ---
    h1, st1 = conv1_call(xcat, w1T, b1, mask, H=H, W=W, n_out_ch=Cop)
    # --- BN1+ReLU fused into conv2 prologue; conv2 (+ BN2 per-batch stats) ---
    h2, st2 = conv2_call(h1, st1, g1, be1, w2T, b2, mask, H=H, W=W, count=count)
    # --- BN2 + ReLU + lane-dense compaction; free NCHW reshape afterwards ---
    out = bn_relu_out_call(h2, st2, g2, be2, H=H, W=W, count=count, c_out=Cout)
    return out.reshape(N, Cout, H, W)


def init_params(key, in_ch, out_ch):
    c_half = in_ch // 2
    ks = jax.random.split(key, 6)
    return {
        # ConvTranspose2d(in_ch//2, in_ch//2, 2, stride=2): weight (in, out, 2, 2)
        "up_w": 0.1 * jax.random.normal(ks[0], (c_half, c_half, 2, 2), jnp.float32),
        "up_b": 0.1 * jax.random.normal(ks[1], (c_half,), jnp.float32),
        # double_conv conv1: Conv2d(in_ch, out_ch, 3, padding=1), OIHW
        "w1": 0.1 * jax.random.normal(ks[2], (out_ch, in_ch, 3, 3), jnp.float32),
        "b1": 0.1 * jax.random.normal(ks[3], (out_ch,), jnp.float32),
        "g1": jnp.ones((out_ch,), jnp.float32),
        "be1": jnp.zeros((out_ch,), jnp.float32),
        # double_conv conv2: Conv2d(out_ch, out_ch, 3, padding=1), OIHW
        "w2": 0.1 * jax.random.normal(ks[4], (out_ch, out_ch, 3, 3), jnp.float32),
        "b2": 0.1 * jax.random.normal(ks[5], (out_ch,), jnp.float32),
        "g2": jnp.ones((out_ch,), jnp.float32),
        "be2": jnp.zeros((out_ch,), jnp.float32),
    }


if __name__ == "__main__":
    in_ch, out_ch = 8, 4
    key = jax.random.PRNGKey(0)
    k1, k2, k3 = jax.random.split(key, 3)

    # x1: low-res features (in_ch//2 ch), x2: skip connection (in_ch//2 ch), NCHW
    x1 = jax.random.normal(k1, (2, in_ch // 2, 8, 8), jnp.float32)
    x2 = jax.random.normal(k2, (2, in_ch // 2, 16, 16), jnp.float32)
    params = init_params(k3, in_ch, out_ch)

    out = up_forward(x1, x2, params)
    out = jax.block_until_ready(out)
    assert out.shape == (2, out_ch, 16, 16), out.shape
    assert out.dtype == jnp.float32
    print("KERNEL_OK")
</pallas_src>

<mosaic_0001>
module attributes {stable_mosaic.version = 11 : i64} {
  func.func @_conv1_kernel(%arg0: i32, %arg1: memref<1x8x342xbf16, #tpu.memory_space<vmem>>, %arg2: memref<8x72xbf16, #tpu.memory_space<vmem>>, %arg3: memref<8x1xf32, #tpu.memory_space<vmem>>, %arg4: memref<1x288xf32, #tpu.memory_space<vmem>>, %arg5: memref<1x8x288xbf16, #tpu.memory_space<vmem>>, %arg6: memref<1x8x2xf32, #tpu.memory_space<vmem>>) attributes {dimension_semantics = [#tpu.dimension_semantics<parallel>], iteration_bounds = array<i64: 2>, scalar_prefetch = 0 : i64, scratch_operands = 0 : i64, tpu.core_type = #tpu.core_type<tc>, window_params = [{transform_indices = @transform_0, window_bounds = array<i64: 1, 8, 342>}, {pipeline_mode = #tpu.pipeline_mode<synchronous>, transform_indices = @transform_1, window_bounds = array<i64: 8, 72>}, {pipeline_mode = #tpu.pipeline_mode<synchronous>, transform_indices = @transform_2, window_bounds = array<i64: 8, 1>}, {pipeline_mode = #tpu.pipeline_mode<synchronous>, transform_indices = @transform_3, window_bounds = array<i64: 1, 288>}, {transform_indices = @transform_4, window_bounds = array<i64: 1, 8, 288>}, {transform_indices = @transform_5, window_bounds = array<i64: 1, 8, 2>}]} {
    %c0 = arith.constant 0 : index
    %c0_0 = arith.constant 0 : index
    %c0_1 = arith.constant 0 : index
    %0 = vector.load %arg1[%c0, %c0_0, %c0_1] : memref<1x8x342xbf16, #tpu.memory_space<vmem>>, vector<1x8x342xbf16>
    %1 = vector.shape_cast %0 : vector<1x8x342xbf16> to vector<8x342xbf16>
    %2 = arith.extf %1 : vector<8x342xbf16> to vector<8x342xf32>
    %3 = vector.extract_strided_slice %2 {offsets = [0, 0], sizes = [8, 288], strides = [1, 1]} : vector<8x342xf32> to vector<8x288xf32>
    %4 = vector.extract_strided_slice %2 {offsets = [0, 1], sizes = [8, 288], strides = [1, 1]} : vector<8x342xf32> to vector<8x288xf32>
    %5 = vector.extract_strided_slice %2 {offsets = [0, 2], sizes = [8, 288], strides = [1, 1]} : vector<8x342xf32> to vector<8x288xf32>
    %6 = vector.extract_strided_slice %2 {offsets = [0, 18], sizes = [8, 288], strides = [1, 1]} : vector<8x342xf32> to vector<8x288xf32>
    %7 = vector.extract_strided_slice %2 {offsets = [0, 19], sizes = [8, 288], strides = [1, 1]} : vector<8x342xf32> to vector<8x288xf32>
    %8 = vector.extract_strided_slice %2 {offsets = [0, 20], sizes = [8, 288], strides = [1, 1]} : vector<8x342xf32> to vector<8x288xf32>
    %9 = vector.extract_strided_slice %2 {offsets = [0, 36], sizes = [8, 288], strides = [1, 1]} : vector<8x342xf32> to vector<8x288xf32>
    %10 = vector.extract_strided_slice %2 {offsets = [0, 37], sizes = [8, 288], strides = [1, 1]} : vector<8x342xf32> to vector<8x288xf32>
    %11 = vector.extract_strided_slice %2 {offsets = [0, 38], sizes = [8, 288], strides = [1, 1]} : vector<8x342xf32> to vector<8x288xf32>
    %12 = tpu.concatenate %3, %4, %5, %6, %7, %8, %9, %10, %11 in 0 : vector<8x288xf32>, vector<8x288xf32>, vector<8x288xf32>, vector<8x288xf32>, vector<8x288xf32>, vector<8x288xf32>, vector<8x288xf32>, vector<8x288xf32>, vector<8x288xf32> -> vector<72x288xf32>
    %13 = arith.truncf %12 : vector<72x288xf32> to vector<72x288xbf16>
    %c0_2 = arith.constant 0 : index
    %c0_3 = arith.constant 0 : index
    %14 = vector.load %arg2[%c0_2, %c0_3] : memref<8x72xbf16, #tpu.memory_space<vmem>>, vector<8x72xbf16>
    %cst = arith.constant dense<0.000000e+00> : vector<8x288xf32>
    %15 = tpu.matmul %14, %13, %cst {dimension_numbers = #tpu.dot_dimension_numbers<[1], [0], [0], [1], [0, 0, 1, 1], [], []>} : vector<8x72xbf16>, vector<72x288xbf16>, vector<8x288xf32> -> vector<8x288xf32>
    %c0_4 = arith.constant 0 : index
    %c0_5 = arith.constant 0 : index
    %16 = vector.load %arg3[%c0_4, %c0_5] : memref<8x1xf32, #tpu.memory_space<vmem>>, vector<8x1xf32>
    %17 = vector.broadcast %16 : vector<8x1xf32> to vector<8x288xf32>
    %18 = arith.addf %15, %17 : vector<8x288xf32>
    %c0_6 = arith.constant 0 : index
    %c0_7 = arith.constant 0 : index
    %19 = vector.load %arg4[%c0_6, %c0_7] : memref<1x288xf32, #tpu.memory_space<vmem>>, vector<1x288xf32>
    %20 = vector.broadcast %19 : vector<1x288xf32> to vector<8x288xf32>
    %21 = arith.mulf %18, %20 : vector<8x288xf32>
    %22 = arith.truncf %21 : vector<8x288xf32> to vector<8x288xbf16>
    %c0_8 = arith.constant 0 : index
    %c0_9 = arith.constant 0 : index
    %c0_10 = arith.constant 0 : index
    %23 = vector.load %arg5[%c0_8, %c0_9, %c0_10] : memref<1x8x288xbf16, #tpu.memory_space<vmem>>, vector<1x8x288xbf16>
    %24 = vector.shape_cast %23 : vector<1x8x288xbf16> to vector<8x288xbf16>
    %25 = vector.shape_cast %22 : vector<8x288xbf16> to vector<1x8x288xbf16>
    tpu.vector_store %arg5[%c0_8, %c0_9, %c0_10], %25 {strides = array<i32>} : memref<1x8x288xbf16, #tpu.memory_space<vmem>>, vector<1x8x288xbf16>,
    %cst_11 = arith.constant dense<0.000000e+00> : vector<8xf32>
    %26 = vector.multi_reduction <add>, %21, %cst_11 [1] : vector<8x288xf32> to vector<8xf32>
    %27 = vector.shape_cast %26 : vector<8xf32> to vector<8x1xf32>
    %28 = arith.mulf %21, %21 : vector<8x288xf32>
    %cst_12 = arith.constant dense<0.000000e+00> : vector<8xf32>
    %29 = vector.multi_reduction <add>, %28, %cst_12 [1] : vector<8x288xf32> to vector<8xf32>
    %30 = vector.shape_cast %29 : vector<8xf32> to vector<8x1xf32>
    %31 = tpu.concatenate %27, %30 in 1 : vector<8x1xf32>, vector<8x1xf32> -> vector<8x2xf32>
    %c0_13 = arith.constant 0 : index
    %c0_14 = arith.constant 0 : index
    %c0_15 = arith.constant 0 : index
    %32 = vector.load %arg6[%c0_13, %c0_14, %c0_15] : memref<1x8x2xf32, #tpu.memory_space<vmem>>, vector<1x8x2xf32>
    %33 = vector.shape_cast %32 : vector<1x8x2xf32> to vector<8x2xf32>
    %34 = vector.shape_cast %31 : vector<8x2xf32> to vector<1x8x2xf32>
    tpu.vector_store %arg6[%c0_13, %c0_14, %c0_15], %34 {strides = array<i32>} : memref<1x8x2xf32, #tpu.memory_space<vmem>>, vector<1x8x2xf32>,
    return
  }
  func.func @transform_0(%arg0: i32) -> (i32, i32, i32) {
    %c0_i32 = arith.constant 0 : i32
    %c0_i32_0 = arith.constant 0 : i32
    %c0_i32_1 = arith.constant 0 : i32
    return %arg0, %c0_i32, %c0_i32_0 : i32, i32, i32
  }
  func.func @transform_1(%arg0: i32) -> (i32, i32) {
    %c0_i32 = arith.constant 0 : i32
    %c0_i32_0 = arith.constant 0 : i32
    %c0_i32_1 = arith.constant 0 : i32
    return %c0_i32, %c0_i32_0 : i32, i32
  }
  func.func @transform_2(%arg0: i32) -> (i32, i32) {
    %c0_i32 = arith.constant 0 : i32
    %c0_i32_0 = arith.constant 0 : i32
    %c0_i32_1 = arith.constant 0 : i32
    return %c0_i32, %c0_i32_0 : i32, i32
  }
  func.func @transform_3(%arg0: i32) -> (i32, i32) {
    %c0_i32 = arith.constant 0 : i32
    %c0_i32_0 = arith.constant 0 : i32
    %c0_i32_1 = arith.constant 0 : i32
    return %c0_i32, %c0_i32_0 : i32, i32
  }
  func.func @transform_4(%arg0: i32) -> (i32, i32, i32) {
    %c0_i32 = arith.constant 0 : i32
    %c0_i32_0 = arith.constant 0 : i32
    %c0_i32_1 = arith.constant 0 : i32
    return %arg0, %c0_i32, %c0_i32_0 : i32, i32, i32
  }
  func.func @transform_5(%arg0: i32) -> (i32, i32, i32) {
    %c0_i32 = arith.constant 0 : i32
    %c0_i32_0 = arith.constant 0 : i32
    %c0_i32_1 = arith.constant 0 : i32
    return %arg0, %c0_i32, %c0_i32_0 : i32, i32, i32
  }
}

module attributes {stable_mosaic.version = 11 : i64} {
  func.func @_bn_relu_out_kernel(%arg0: i32, %arg1: memref<1x8x288xbf16, #tpu.memory_space<vmem>>, %arg2: memref<2x8x2xf32, #tpu.memory_space<vmem>>, %arg3: memref<8x1xf32, #tpu.memory_space<vmem>>, %arg4: memref<8x1xf32, #tpu.memory_space<vmem>>, %arg5: memref<1x4x256xf32, #tpu.memory_space<vmem>>) attributes {dimension_semantics = [#tpu.dimension_semantics<parallel>], iteration_bounds = array<i64: 2>, scalar_prefetch = 0 : i64, scratch_operands = 0 : i64, tpu.core_type = #tpu.core_type<tc>, window_params = [{transform_indices = @transform_0, window_bounds = array<i64: 1, 8, 288>}, {pipeline_mode = #tpu.pipeline_mode<synchronous>, transform_indices = @transform_1, window_bounds = array<i64: 2, 8, 2>}, {pipeline_mode = #tpu.pipeline_mode<synchronous>, transform_indices = @transform_2, window_bounds = array<i64: 8, 1>}, {pipeline_mode = #tpu.pipeline_mode<synchronous>, transform_indices = @transform_3, window_bounds = array<i64: 8, 1>}, {transform_indices = @transform_4, window_bounds = array<i64: 1, 4, 256>}]} {
    %c0 = arith.constant 0 : index
    %c0_0 = arith.constant 0 : index
    %c0_1 = arith.constant 0 : index
    %0 = vector.load %arg2[%c0, %c0_0, %c0_1] : memref<2x8x2xf32, #tpu.memory_space<vmem>>, vector<2x8x2xf32>
    %cst = arith.constant dense<0.000000e+00> : vector<8x2xf32>
    %1 = vector.multi_reduction <add>, %0, %cst [0] : vector<2x8x2xf32> to vector<8x2xf32>
    %2 = vector.extract_strided_slice %1 {offsets = [0, 0], sizes = [8, 1], strides = [1, 1]} : vector<8x2xf32> to vector<8x1xf32>
    %cst_2 = arith.constant 5.120000e+02 : f32
    %3 = vector.broadcast %cst_2 : f32 to vector<8x1xf32>
    %4 = arith.divf %2, %3 : vector<8x1xf32>
    %5 = vector.extract_strided_slice %1 {offsets = [0, 1], sizes = [8, 1], strides = [1, 1]} : vector<8x2xf32> to vector<8x1xf32>
    %cst_3 = arith.constant 5.120000e+02 : f32
    %6 = vector.broadcast %cst_3 : f32 to vector<8x1xf32>
    %7 = arith.divf %5, %6 : vector<8x1xf32>
    %8 = arith.mulf %4, %4 : vector<8x1xf32>
    %9 = arith.subf %7, %8 : vector<8x1xf32>
    %cst_4 = arith.constant 0.000000e+00 : f32
    %10 = vector.broadcast %cst_4 : f32 to vector<8x1xf32>
    %11 = arith.maximumf %9, %10 : vector<8x1xf32>
    %c0_5 = arith.constant 0 : index
    %c0_6 = arith.constant 0 : index
    %12 = vector.load %arg3[%c0_5, %c0_6] : memref<8x1xf32, #tpu.memory_space<vmem>>, vector<8x1xf32>
    %cst_7 = arith.constant 9.99999974E-6 : f32
    %13 = vector.broadcast %cst_7 : f32 to vector<8x1xf32>
    %14 = arith.addf %11, %13 : vector<8x1xf32>
    %15 = math.rsqrt %14 : vector<8x1xf32>
    %16 = arith.mulf %12, %15 : vector<8x1xf32>
    %c0_8 = arith.constant 0 : index
    %c0_9 = arith.constant 0 : index
    %17 = vector.load %arg4[%c0_8, %c0_9] : memref<8x1xf32, #tpu.memory_space<vmem>>, vector<8x1xf32>
    %18 = arith.mulf %4, %16 : vector<8x1xf32>
    %19 = arith.subf %17, %18 : vector<8x1xf32>
    %c0_10 = arith.constant 0 : index
    %c0_11 = arith.constant 0 : index
    %c0_12 = arith.constant 0 : index
    %20 = vector.load %arg1[%c0_10, %c0_11, %c0_12] : memref<1x8x288xbf16, #tpu.memory_space<vmem>>, vector<1x8x288xbf16>
    %21 = vector.shape_cast %20 : vector<1x8x288xbf16> to vector<8x288xbf16>
    %22 = arith.extf %21 : vector<8x288xbf16> to vector<8x288xf32>
    %23 = vector.extract_strided_slice %22 {offsets = [0, 0], sizes = [8, 16], strides = [1, 1]} : vector<8x288xf32> to vector<8x16xf32>
    %24 = vector.extract_strided_slice %22 {offsets = [0, 18], sizes = [8, 16], strides = [1, 1]} : vector<8x288xf32> to vector<8x16xf32>
    %25 = vector.extract_strided_slice %22 {offsets = [0, 36], sizes = [8, 16], strides = [1, 1]} : vector<8x288xf32> to vector<8x16xf32>
    %26 = vector.extract_strided_slice %22 {offsets = [0, 54], sizes = [8, 16], strides = [1, 1]} : vector<8x288xf32> to vector<8x16xf32>
    %27 = vector.extract_strided_slice %22 {offsets = [0, 72], sizes = [8, 16], strides = [1, 1]} : vector<8x288xf32> to vector<8x16xf32>
    %28 = vector.extract_strided_slice %22 {offsets = [0, 90], sizes = [8, 16], strides = [1, 1]} : vector<8x288xf32> to vector<8x16xf32>
    %29 = vector.extract_strided_slice %22 {offsets = [0, 108], sizes = [8, 16], strides = [1, 1]} : vector<8x288xf32> to vector<8x16xf32>
    %30 = vector.extract_strided_slice %22 {offsets = [0, 126], sizes = [8, 16], strides = [1, 1]} : vector<8x288xf32> to vector<8x16xf32>
    %31 = vector.extract_strided_slice %22 {offsets = [0, 144], sizes = [8, 16], strides = [1, 1]} : vector<8x288xf32> to vector<8x16xf32>
    %32 = vector.extract_strided_slice %22 {offsets = [0, 162], sizes = [8, 16], strides = [1, 1]} : vector<8x288xf32> to vector<8x16xf32>
    %33 = vector.extract_strided_slice %22 {offsets = [0, 180], sizes = [8, 16], strides = [1, 1]} : vector<8x288xf32> to vector<8x16xf32>
    %34 = vector.extract_strided_slice %22 {offsets = [0, 198], sizes = [8, 16], strides = [1, 1]} : vector<8x288xf32> to vector<8x16xf32>
    %35 = vector.extract_strided_slice %22 {offsets = [0, 216], sizes = [8, 16], strides = [1, 1]} : vector<8x288xf32> to vector<8x16xf32>
    %36 = vector.extract_strided_slice %22 {offsets = [0, 234], sizes = [8, 16], strides = [1, 1]} : vector<8x288xf32> to vector<8x16xf32>
    %37 = vector.extract_strided_slice %22 {offsets = [0, 252], sizes = [8, 16], strides = [1, 1]} : vector<8x288xf32> to vector<8x16xf32>
    %38 = vector.extract_strided_slice %22 {offsets = [0, 270], sizes = [8, 16], strides = [1, 1]} : vector<8x288xf32> to vector<8x16xf32>
    %39 = tpu.concatenate %23, %24, %25, %26, %27, %28, %29, %30, %31, %32, %33, %34, %35, %36, %37, %38 in 1 : vector<8x16xf32>, vector<8x16xf32>, vector<8x16xf32>, vector<8x16xf32>, vector<8x16xf32>, vector<8x16xf32>, vector<8x16xf32>, vector<8x16xf32>, vector<8x16xf32>, vector<8x16xf32>, vector<8x16xf32>, vector<8x16xf32>, vector<8x16xf32>, vector<8x16xf32>, vector<8x16xf32>, vector<8x16xf32> -> vector<8x256xf32>
    %40 = vector.broadcast %16 : vector<8x1xf32> to vector<8x256xf32>
    %41 = arith.mulf %39, %40 : vector<8x256xf32>
    %42 = vector.broadcast %19 : vector<8x1xf32> to vector<8x256xf32>
    %43 = arith.addf %41, %42 : vector<8x256xf32>
    %cst_13 = arith.constant 0.000000e+00 : f32
    %44 = vector.broadcast %cst_13 : f32 to vector<8x256xf32>
    %45 = arith.maximumf %43, %44 : vector<8x256xf32>
    %46 = vector.extract_strided_slice %45 {offsets = [0, 0], sizes = [4, 256], strides = [1, 1]} : vector<8x256xf32> to vector<4x256xf32>
    %c0_14 = arith.constant 0 : index
    %c0_15 = arith.constant 0 : index
    %c0_16 = arith.constant 0 : index
    %47 = vector.load %arg5[%c0_14, %c0_15, %c0_16] : memref<1x4x256xf32, #tpu.memory_space<vmem>>, vector<1x4x256xf32>
    %48 = vector.shape_cast %47 : vector<1x4x256xf32> to vector<4x256xf32>
    %49 = vector.shape_cast %46 : vector<4x256xf32> to vector<1x4x256xf32>
    tpu.vector_store %arg5[%c0_14, %c0_15, %c0_16], %49 {strides = array<i32>} : memref<1x4x256xf32, #tpu.memory_space<vmem>>, vector<1x4x256xf32>,
    return
  }
  func.func @transform_0(%arg0: i32) -> (i32, i32, i32) {
    %c0_i32 = arith.constant 0 : i32
    %c0_i32_0 = arith.constant 0 : i32
    %c0_i32_1 = arith.constant 0 : i32
    return %arg0, %c0_i32, %c0_i32_0 : i32, i32, i32
  }
  func.func @transform_1(%arg0: i32) -> (i32, i32, i32) {
    %c0_i32 = arith.constant 0 : i32
    %c0_i32_0 = arith.constant 0 : i32
    %c0_i32_1 = arith.constant 0 : i32
    %c0_i32_2 = arith.constant 0 : i32
    return %c0_i32, %c0_i32_0, %c0_i32_1 : i32, i32, i32
  }
  func.func @transform_2(%arg0: i32) -> (i32, i32) {
    %c0_i32 = arith.constant 0 : i32
    %c0_i32_0 = arith.constant 0 : i32
    %c0_i32_1 = arith.constant 0 : i32
    return %c0_i32, %c0_i32_0 : i32, i32
  }
  func.func @transform_3(%arg0: i32) -> (i32, i32) {
    %c0_i32 = arith.constant 0 : i32
    %c0_i32_0 = arith.constant 0 : i32
    %c0_i32_1 = arith.constant 0 : i32
    return %c0_i32, %c0_i32_0 : i32, i32
  }
  func.func @transform_4(%arg0: i32) -> (i32, i32, i32) {
    %c0_i32 = arith.constant 0 : i32
    %c0_i32_0 = arith.constant 0 : i32
    %c0_i32_1 = arith.constant 0 : i32
    return %arg0, %c0_i32, %c0_i32_0 : i32, i32, i32
  }
}

module attributes {stable_mosaic.version = 11 : i64} {
  func.func @_conv2_kernel(%arg0: i32, %arg1: memref<1x8x288xbf16, #tpu.memory_space<vmem>>, %arg2: memref<2x8x2xf32, #tpu.memory_space<vmem>>, %arg3: memref<8x1xf32, #tpu.memory_space<vmem>>, %arg4: memref<8x1xf32, #tpu.memory_space<vmem>>, %arg5: memref<8x72xbf16, #tpu.memory_space<vmem>>, %arg6: memref<8x1xf32, #tpu.memory_space<vmem>>, %arg7: memref<1x288xf32, #tpu.memory_space<vmem>>, %arg8: memref<1x8x288xbf16, #tpu.memory_space<vmem>>, %arg9: memref<1x8x2xf32, #tpu.memory_space<vmem>>, %arg10: memref<8x342xf32, #tpu.memory_space<vmem>>) attributes {dimension_semantics = [#tpu.dimension_semantics<parallel>], iteration_bounds = array<i64: 2>, scalar_prefetch = 0 : i64, scratch_operands = 1 : i64, tpu.core_type = #tpu.core_type<tc>, window_params = [{transform_indices = @transform_0, window_bounds = array<i64: 1, 8, 288>}, {pipeline_mode = #tpu.pipeline_mode<synchronous>, transform_indices = @transform_1, window_bounds = array<i64: 2, 8, 2>}, {pipeline_mode = #tpu.pipeline_mode<synchronous>, transform_indices = @transform_2, window_bounds = array<i64: 8, 1>}, {pipeline_mode = #tpu.pipeline_mode<synchronous>, transform_indices = @transform_3, window_bounds = array<i64: 8, 1>}, {pipeline_mode = #tpu.pipeline_mode<synchronous>, transform_indices = @transform_4, window_bounds = array<i64: 8, 72>}, {pipeline_mode = #tpu.pipeline_mode<synchronous>, transform_indices = @transform_5, window_bounds = array<i64: 8, 1>}, {pipeline_mode = #tpu.pipeline_mode<synchronous>, transform_indices = @transform_6, window_bounds = array<i64: 1, 288>}, {transform_indices = @transform_7, window_bounds = array<i64: 1, 8, 288>}, {transform_indices = @transform_8, window_bounds = array<i64: 1, 8, 2>}]} {
    %c0 = arith.constant 0 : index
    %c0_0 = arith.constant 0 : index
    %c0_1 = arith.constant 0 : index
    %0 = vector.load %arg2[%c0, %c0_0, %c0_1] : memref<2x8x2xf32, #tpu.memory_space<vmem>>, vector<2x8x2xf32>
    %cst = arith.constant dense<0.000000e+00> : vector<8x2xf32>
    %1 = vector.multi_reduction <add>, %0, %cst [0] : vector<2x8x2xf32> to vector<8x2xf32>
    %2 = vector.extract_strided_slice %1 {offsets = [0, 0], sizes = [8, 1], strides = [1, 1]} : vector<8x2xf32> to vector<8x1xf32>
    %cst_2 = arith.constant 5.120000e+02 : f32
    %3 = vector.broadcast %cst_2 : f32 to vector<8x1xf32>
    %4 = arith.divf %2, %3 : vector<8x1xf32>
    %5 = vector.extract_strided_slice %1 {offsets = [0, 1], sizes = [8, 1], strides = [1, 1]} : vector<8x2xf32> to vector<8x1xf32>
    %cst_3 = arith.constant 5.120000e+02 : f32
    %6 = vector.broadcast %cst_3 : f32 to vector<8x1xf32>
    %7 = arith.divf %5, %6 : vector<8x1xf32>
    %8 = arith.mulf %4, %4 : vector<8x1xf32>
    %9 = arith.subf %7, %8 : vector<8x1xf32>
    %cst_4 = arith.constant 0.000000e+00 : f32
    %10 = vector.broadcast %cst_4 : f32 to vector<8x1xf32>
    %11 = arith.maximumf %9, %10 : vector<8x1xf32>
    %c0_5 = arith.constant 0 : index
    %c0_6 = arith.constant 0 : index
    %12 = vector.load %arg3[%c0_5, %c0_6] : memref<8x1xf32, #tpu.memory_space<vmem>>, vector<8x1xf32>
    %cst_7 = arith.constant 9.99999974E-6 : f32
    %13 = vector.broadcast %cst_7 : f32 to vector<8x1xf32>
    %14 = arith.addf %11, %13 : vector<8x1xf32>
    %15 = math.rsqrt %14 : vector<8x1xf32>
    %16 = arith.mulf %12, %15 : vector<8x1xf32>
    %c0_8 = arith.constant 0 : index
    %c0_9 = arith.constant 0 : index
    %17 = vector.load %arg4[%c0_8, %c0_9] : memref<8x1xf32, #tpu.memory_space<vmem>>, vector<8x1xf32>
    %18 = arith.mulf %4, %16 : vector<8x1xf32>
    %19 = arith.subf %17, %18 : vector<8x1xf32>
    %c0_10 = arith.constant 0 : index
    %c0_11 = arith.constant 0 : index
    %c0_12 = arith.constant 0 : index
    %20 = vector.load %arg1[%c0_10, %c0_11, %c0_12] : memref<1x8x288xbf16, #tpu.memory_space<vmem>>, vector<1x8x288xbf16>
    %21 = vector.shape_cast %20 : vector<1x8x288xbf16> to vector<8x288xbf16>
    %22 = arith.extf %21 : vector<8x288xbf16> to vector<8x288xf32>
    %23 = vector.broadcast %16 : vector<8x1xf32> to vector<8x288xf32>
    %24 = arith.mulf %22, %23 : vector<8x288xf32>
    %25 = vector.broadcast %19 : vector<8x1xf32> to vector<8x288xf32>
    %26 = arith.addf %24, %25 : vector<8x288xf32>
    %cst_13 = arith.constant 0.000000e+00 : f32
    %27 = vector.broadcast %cst_13 : f32 to vector<8x288xf32>
    %28 = arith.maximumf %26, %27 : vector<8x288xf32>
    %c0_14 = arith.constant 0 : index
    %c0_15 = arith.constant 0 : index
    %29 = vector.load %arg7[%c0_14, %c0_15] : memref<1x288xf32, #tpu.memory_space<vmem>>, vector<1x288xf32>
    %30 = vector.broadcast %29 : vector<1x288xf32> to vector<8x288xf32>
    %31 = arith.mulf %28, %30 : vector<8x288xf32>
    %cst_16 = arith.constant 0.000000e+00 : f32
    %32 = vector.broadcast %cst_16 : f32 to vector<8x19xf32>
    %c0_17 = arith.constant 0 : index
    %c0_18 = arith.constant 0 : index
    %33 = vector.load %arg10[%c0_17, %c0_18] : memref<8x342xf32, #tpu.memory_space<vmem>>, vector<8x19xf32>
    tpu.vector_store %arg10[%c0_17, %c0_18], %32 {strides = array<i32>} : memref<8x342xf32, #tpu.memory_space<vmem>>, vector<8x19xf32>,
    %cst_19 = arith.constant 0.000000e+00 : f32
    %34 = vector.broadcast %cst_19 : f32 to vector<8x35xf32>
    %c0_20 = arith.constant 0 : index
    %c307 = arith.constant 307 : index
    %35 = vector.load %arg10[%c0_20, %c307] : memref<8x342xf32, #tpu.memory_space<vmem>>, vector<8x35xf32>
    tpu.vector_store %arg10[%c0_20, %c307], %34 {strides = array<i32>} : memref<8x342xf32, #tpu.memory_space<vmem>>, vector<8x35xf32>,
    %c0_21 = arith.constant 0 : index
    %c19 = arith.constant 19 : index
    %36 = vector.load %arg10[%c0_21, %c19] : memref<8x342xf32, #tpu.memory_space<vmem>>, vector<8x288xf32>
    tpu.vector_store %arg10[%c0_21, %c19], %31 {strides = array<i32>} : memref<8x342xf32, #tpu.memory_space<vmem>>, vector<8x288xf32>,
    %c0_22 = arith.constant 0 : index
    %c0_23 = arith.constant 0 : index
    %37 = vector.load %arg10[%c0_22, %c0_23] : memref<8x342xf32, #tpu.memory_space<vmem>>, vector<8x342xf32>
    %38 = vector.extract_strided_slice %37 {offsets = [0, 0], sizes = [8, 288], strides = [1, 1]} : vector<8x342xf32> to vector<8x288xf32>
    %39 = vector.extract_strided_slice %37 {offsets = [0, 1], sizes = [8, 288], strides = [1, 1]} : vector<8x342xf32> to vector<8x288xf32>
    %40 = vector.extract_strided_slice %37 {offsets = [0, 2], sizes = [8, 288], strides = [1, 1]} : vector<8x342xf32> to vector<8x288xf32>
    %41 = vector.extract_strided_slice %37 {offsets = [0, 18], sizes = [8, 288], strides = [1, 1]} : vector<8x342xf32> to vector<8x288xf32>
    %42 = vector.extract_strided_slice %37 {offsets = [0, 19], sizes = [8, 288], strides = [1, 1]} : vector<8x342xf32> to vector<8x288xf32>
    %43 = vector.extract_strided_slice %37 {offsets = [0, 20], sizes = [8, 288], strides = [1, 1]} : vector<8x342xf32> to vector<8x288xf32>
    %44 = vector.extract_strided_slice %37 {offsets = [0, 36], sizes = [8, 288], strides = [1, 1]} : vector<8x342xf32> to vector<8x288xf32>
    %45 = vector.extract_strided_slice %37 {offsets = [0, 37], sizes = [8, 288], strides = [1, 1]} : vector<8x342xf32> to vector<8x288xf32>
    %46 = vector.extract_strided_slice %37 {offsets = [0, 38], sizes = [8, 288], strides = [1, 1]} : vector<8x342xf32> to vector<8x288xf32>
    %47 = tpu.concatenate %38, %39, %40, %41, %42, %43, %44, %45, %46 in 0 : vector<8x288xf32>, vector<8x288xf32>, vector<8x288xf32>, vector<8x288xf32>, vector<8x288xf32>, vector<8x288xf32>, vector<8x288xf32>, vector<8x288xf32>, vector<8x288xf32> -> vector<72x288xf32>
    %48 = arith.truncf %47 : vector<72x288xf32> to vector<72x288xbf16>
    %c0_24 = arith.constant 0 : index
    %c0_25 = arith.constant 0 : index
    %49 = vector.load %arg5[%c0_24, %c0_25] : memref<8x72xbf16, #tpu.memory_space<vmem>>, vector<8x72xbf16>
    %cst_26 = arith.constant dense<0.000000e+00> : vector<8x288xf32>
    %50 = tpu.matmul %49, %48, %cst_26 {dimension_numbers = #tpu.dot_dimension_numbers<[1], [0], [0], [1], [0, 0, 1, 1], [], []>} : vector<8x72xbf16>, vector<72x288xbf16>, vector<8x288xf32> -> vector<8x288xf32>
    %c0_27 = arith.constant 0 : index
    %c0_28 = arith.constant 0 : index
    %51 = vector.load %arg6[%c0_27, %c0_28] : memref<8x1xf32, #tpu.memory_space<vmem>>, vector<8x1xf32>
    %52 = vector.broadcast %51 : vector<8x1xf32> to vector<8x288xf32>
    %53 = arith.addf %50, %52 : vector<8x288xf32>
    %c0_29 = arith.constant 0 : index
    %c0_30 = arith.constant 0 : index
    %54 = vector.load %arg7[%c0_29, %c0_30] : memref<1x288xf32, #tpu.memory_space<vmem>>, vector<1x288xf32>
    %55 = vector.broadcast %54 : vector<1x288xf32> to vector<8x288xf32>
    %56 = arith.mulf %53, %55 : vector<8x288xf32>
    %57 = arith.truncf %56 : vector<8x288xf32> to vector<8x288xbf16>
    %c0_31 = arith.constant 0 : index
    %c0_32 = arith.constant 0 : index
    %c0_33 = arith.constant 0 : index
    %58 = vector.load %arg8[%c0_31, %c0_32, %c0_33] : memref<1x8x288xbf16, #tpu.memory_space<vmem>>, vector<1x8x288xbf16>
    %59 = vector.shape_cast %58 : vector<1x8x288xbf16> to vector<8x288xbf16>
    %60 = vector.shape_cast %57 : vector<8x288xbf16> to vector<1x8x288xbf16>
    tpu.vector_store %arg8[%c0_31, %c0_32, %c0_33], %60 {strides = array<i32>} : memref<1x8x288xbf16, #tpu.memory_space<vmem>>, vector<1x8x288xbf16>,
    %cst_34 = arith.constant dense<0.000000e+00> : vector<8xf32>
    %61 = vector.multi_reduction <add>, %56, %cst_34 [1] : vector<8x288xf32> to vector<8xf32>
    %62 = vector.shape_cast %61 : vector<8xf32> to vector<8x1xf32>
    %63 = arith.mulf %56, %56 : vector<8x288xf32>
    %cst_35 = arith.constant dense<0.000000e+00> : vector<8xf32>
    %64 = vector.multi_reduction <add>, %63, %cst_35 [1] : vector<8x288xf32> to vector<8xf32>
    %65 = vector.shape_cast %64 : vector<8xf32> to vector<8x1xf32>
    %66 = tpu.concatenate %62, %65 in 1 : vector<8x1xf32>, vector<8x1xf32> -> vector<8x2xf32>
    %c0_36 = arith.constant 0 : index
    %c0_37 = arith.constant 0 : index
    %c0_38 = arith.constant 0 : index
    %67 = vector.load %arg9[%c0_36, %c0_37, %c0_38] : memref<1x8x2xf32, #tpu.memory_space<vmem>>, vector<1x8x2xf32>
    %68 = vector.shape_cast %67 : vector<1x8x2xf32> to vector<8x2xf32>
    %69 = vector.shape_cast %66 : vector<8x2xf32> to vector<1x8x2xf32>
    tpu.vector_store %arg9[%c0_36, %c0_37, %c0_38], %69 {strides = array<i32>} : memref<1x8x2xf32, #tpu.memory_space<vmem>>, vector<1x8x2xf32>,
    return
  }
  func.func @transform_0(%arg0: i32) -> (i32, i32, i32) {
    %c0_i32 = arith.constant 0 : i32
    %c0_i32_0 = arith.constant 0 : i32
    %c0_i32_1 = arith.constant 0 : i32
    return %arg0, %c0_i32, %c0_i32_0 : i32, i32, i32
  }
  func.func @transform_1(%arg0: i32) -> (i32, i32, i32) {
    %c0_i32 = arith.constant 0 : i32
    %c0_i32_0 = arith.constant 0 : i32
    %c0_i32_1 = arith.constant 0 : i32
    %c0_i32_2 = arith.constant 0 : i32
    return %c0_i32, %c0_i32_0, %c0_i32_1 : i32, i32, i32
  }
  func.func @transform_2(%arg0: i32) -> (i32, i32) {
    %c0_i32 = arith.constant 0 : i32
    %c0_i32_0 = arith.constant 0 : i32
    %c0_i32_1 = arith.constant 0 : i32
    return %c0_i32, %c0_i32_0 : i32, i32
  }
  func.func @transform_3(%arg0: i32) -> (i32, i32) {
    %c0_i32 = arith.constant 0 : i32
    %c0_i32_0 = arith.constant 0 : i32
    %c0_i32_1 = arith.constant 0 : i32
    return %c0_i32, %c0_i32_0 : i32, i32
  }
  func.func @transform_4(%arg0: i32) -> (i32, i32) {
    %c0_i32 = arith.constant 0 : i32
    %c0_i32_0 = arith.constant 0 : i32
    %c0_i32_1 = arith.constant 0 : i32
    return %c0_i32, %c0_i32_0 : i32, i32
  }
  func.func @transform_5(%arg0: i32) -> (i32, i32) {
    %c0_i32 = arith.constant 0 : i32
    %c0_i32_0 = arith.constant 0 : i32
    %c0_i32_1 = arith.constant 0 : i32
    return %c0_i32, %c0_i32_0 : i32, i32
  }
  func.func @transform_6(%arg0: i32) -> (i32, i32) {
    %c0_i32 = arith.constant 0 : i32
    %c0_i32_0 = arith.constant 0 : i32
    %c0_i32_1 = arith.constant 0 : i32
    return %c0_i32, %c0_i32_0 : i32, i32
  }
  func.func @transform_7(%arg0: i32) -> (i32, i32, i32) {
    %c0_i32 = arith.constant 0 : i32
    %c0_i32_0 = arith.constant 0 : i32
    %c0_i32_1 = arith.constant 0 : i32
    return %arg0, %c0_i32, %c0_i32_0 : i32, i32, i32
  }
  func.func @transform_8(%arg0: i32) -> (i32, i32, i32) {
    %c0_i32 = arith.constant 0 : i32
    %c0_i32_0 = arith.constant 0 : i32
    %c0_i32_1 = arith.constant 0 : i32
    return %arg0, %c0_i32, %c0_i32_0 : i32, i32, i32
  }
}

</mosaic_0001>

<llo_original>
// kernel: up_forward.5
$region0: #{up_forward.5}
  #allocation0 [shape = 'u32[]', space=smem, size = 0x4, offset = 0x4, fixed_abs, tag = 'smem constant byte address 0x4 - core index']
  #allocation1 [shape = 'u32[144,128]{1,0:T(1,128)}', space=vmem, size = 0x12000, scoped, tag = 'internal scratch']
  %s0 = inlined_call_operand.vmem [shape: bf16[2,8,288], index: 0, kind: input, shape index: {}]
  %s1 = inlined_call_operand.vmem [shape: f32[2,8,2], index: 1, kind: input, shape index: {}]
  %s2 = inlined_call_operand.vmem [shape: f32[8,1], index: 2, kind: input, shape index: {}]
  %s3 = inlined_call_operand.vmem [shape: f32[8,1], index: 3, kind: input, shape index: {}]
  %s4 = inlined_call_operand.vmem [shape: f32[2,4,256], index: 4, kind: output, shape index: {}]
  %s5 = sld [smem:[#allocation0]]
  $region49: #{up_forward.5} parent=0
    _
  %s7 = ssub.s32 1, %s5
  %s8 = scalar_select 0, %s7, %s5
  loop: start=0, step=1, limit=4
  $region2: #{up_forward.5} parent=0 // loop_pre_header
    _
  $region3: #{up_forward.5} parent=0 // loop_header
    %s10 = sphi 0, %s14
    %p11 = scmp.ge.s32.totalorder %s10, 4
    %s20 = sphi 0, %s22
    %s23 = sphi 0, %s20
    %s24 = sphi 0, %s23
    %s40 = sphi 0, %s24
    %s44 = sphi 0, %s44
    %s46 = sphi 0, %s44
    %s47 = sphi 0, %s46
    %s61 = sphi 0, %s47
    %s65 = sphi 0, %s65
    %s67 = sphi 0, %s65
    %s68 = sphi 0, %s67
    %s82 = sphi 0, %s68
    %s86 = sphi 0, %s86
    %s88 = sphi 0, %s86
    %s89 = sphi 0, %s88
    %s103 = sphi 0, %s89
    %s109 = sphi 0, %s111
    %s112 = sphi 0, %s109
    %s113 = sphi 0, %s112
    %s129 = sphi 0, %s113
  $region4: #{up_forward.5} parent=0 // loop_header_branch
    %13 = sbr.rel (%p11) target = $region8
  $region5: #{up_forward.5} parent=0 // loop_body
    %s15 = ssub.s32 %s10, 1
    %s16 = ssub.s32 %s10, 2
    %s17 = sadd.s32 %s10, 1
    %s18 = ssub.s32 %s10, %s17
    %p19 = scmp.eq.s32.totalorder %s18, 0
    %s21 = sadd.s32 %s20, 1
    %s22 = scalar_select %p19, %s20, %s21
    %p25 = pneg %p19
    %p26 = scmp.eq.s32.totalorder %s10, 1
    %p27 = por %p25, %p26
    %p28 = scmp.ne.s32.totalorder %s20, %s23
    %p29 = scmp.eq.s32.totalorder %s10, 0
    %p30 = por %p28, %p29
    %p31 = scmp.ne.s32.totalorder %s20, %s23
    %p32 = scmp.eq.s32.totalorder %s15, 1
    %p33 = por %p31, %p32
    %p34 = scmp.ne.s32.totalorder %s23, %s24
    %p35 = scmp.eq.s32.totalorder %s15, 0
    %p36 = por %p34, %p35
    %p37 = scmp.ne.s32.totalorder %s23, %s24
    %p38 = scmp.eq.s32.totalorder %s16, 1
    %p39 = por %p37, %p38
    %p41 = scmp.ne.s32.totalorder %s24, %s40
    %p42 = scmp.eq.s32.totalorder %s16, 0
    %p43 = por %p41, %p42
    %s45 = sadd.s32 %s44, 1
    %p48 = scmp.eq.s32.totalorder %s10, 1
    %p49 = scmp.ne.s32.totalorder %s44, %s46
    %p50 = scmp.eq.s32.totalorder %s10, 0
    %p51 = por %p49, %p50
    %p52 = scmp.ne.s32.totalorder %s44, %s46
    %p53 = scmp.eq.s32.totalorder %s15, 1
    %p54 = por %p52, %p53
    %p55 = scmp.ne.s32.totalorder %s46, %s47
    %p56 = scmp.eq.s32.totalorder %s15, 0
    %p57 = por %p55, %p56
    %p58 = scmp.ne.s32.totalorder %s46, %s47
    %p59 = scmp.eq.s32.totalorder %s16, 1
    %p60 = por %p58, %p59
    %p62 = scmp.ne.s32.totalorder %s47, %s61
    %p63 = scmp.eq.s32.totalorder %s16, 0
    %p64 = por %p62, %p63
    %s66 = sadd.s32 %s65, 1
    %p69 = scmp.eq.s32.totalorder %s10, 1
    %p70 = scmp.ne.s32.totalorder %s65, %s67
    %p71 = scmp.eq.s32.totalorder %s10, 0
    %p72 = por %p70, %p71
    %p73 = scmp.ne.s32.totalorder %s65, %s67
    %p74 = scmp.eq.s32.totalorder %s15, 1
    %p75 = por %p73, %p74
    %p76 = scmp.ne.s32.totalorder %s67, %s68
    %p77 = scmp.eq.s32.totalorder %s15, 0
    %p78 = por %p76, %p77
    %p79 = scmp.ne.s32.totalorder %s67, %s68
    %p80 = scmp.eq.s32.totalorder %s16, 1
    %p81 = por %p79, %p80
    %p83 = scmp.ne.s32.totalorder %s68, %s82
    %p84 = scmp.eq.s32.totalorder %s16, 0
    %p85 = por %p83, %p84
    %s87 = sadd.s32 %s86, 1
    %p90 = scmp.eq.s32.totalorder %s10, 1
    %p91 = scmp.ne.s32.totalorder %s86, %s88
    %p92 = scmp.eq.s32.totalorder %s10, 0
    %p93 = por %p91, %p92
    %p94 = scmp.ne.s32.totalorder %s86, %s88
    %p95 = scmp.eq.s32.totalorder %s15, 1
    %p96 = por %p94, %p95
    %p97 = scmp.ne.s32.totalorder %s88, %s89
    %p98 = scmp.eq.s32.totalorder %s15, 0
    %p99 = por %p97, %p98
    %p100 = scmp.ne.s32.totalorder %s88, %s89
    %p101 = scmp.eq.s32.totalorder %s16, 1
    %p102 = por %p100, %p101
    %p104 = scmp.ne.s32.totalorder %s89, %s103
    %p105 = scmp.eq.s32.totalorder %s16, 0
    %p106 = por %p104, %p105
    %s107 = ssub.s32 %s10, %s17
    %p108 = scmp.eq.s32.totalorder %s107, 0
    %s110 = sadd.s32 %s109, 1
    %s111 = scalar_select %p108, %s109, %s110
    %p114 = pneg %p108
    %p115 = scmp.eq.s32.totalorder %s10, 1
    %p116 = por %p114, %p115
    %p117 = scmp.ne.s32.totalorder %s109, %s112
    %p118 = scmp.eq.s32.totalorder %s10, 0
    %p119 = por %p117, %p118
    %p120 = scmp.ne.s32.totalorder %s109, %s112
    %p121 = scmp.eq.s32.totalorder %s15, 1
    %p122 = por %p120, %p121
    %p123 = scmp.ne.s32.totalorder %s112, %s113
    %p124 = scmp.eq.s32.totalorder %s15, 0
    %p125 = por %p123, %p124
    %p126 = scmp.ne.s32.totalorder %s112, %s113
    %p127 = scmp.eq.s32.totalorder %s16, 1
    %p128 = por %p126, %p127
    %p130 = scmp.ne.s32.totalorder %s113, %s129
    %p131 = scmp.eq.s32.totalorder %s16, 0
    %p132 = por %p130, %p131
    %p133 = scmp.le.s32.totalorder 1, %s10
    %p134 = scmp.lt.s32.totalorder %s10, 3
    %p135 = pnand %p133, %p134
    %p136 = pneg %p135
    // Predicated region
    $region9: #{up_forward.5} parent=5 // pred_check
      _
    $region10: #{up_forward.5} parent=5 // pred_check_branch
      %138 = sbr.rel (%p135) target = $region12
    $region11: #{up_forward.5} parent=5 // pred_region
      %s139 = ssub.s32 %s10, 1
      // Predicated region
      $region13: #{up_forward.5} parent=11 // pred_check
        %p140 = pneg %p57
      $region14: #{up_forward.5} parent=11 // pred_check_branch
        %142 = sbr.rel (%p140) target = $region16
      $region15: #{up_forward.5} parent=11 // pred_region
        _
      $region16: #{up_forward.5} parent=11 // pred_fallthru
        _
      // Predicated region
      $region17: #{up_forward.5} parent=11 // pred_check
        %p143 = pneg %p78
      $region18: #{up_forward.5} parent=11 // pred_check_branch
        %145 = sbr.rel (%p143) target = $region20
      $region19: #{up_forward.5} parent=11 // pred_region
        _
      $region20: #{up_forward.5} parent=11 // pred_fallthru
        _
      // Predicated region
      $region21: #{up_forward.5} parent=11 // pred_check
        %p146 = pneg %p99
      $region22: #{up_forward.5} parent=11 // pred_check_branch
        %148 = sbr.rel (%p146) target = $region24
      $region23: #{up_forward.5} parent=11 // pred_region
        _
      $region24: #{up_forward.5} parent=11 // pred_fallthru
        _
    $region12: #{up_forward.5} parent=5 // pred_fallthru
      _
    %p149 = scmp.lt.s32.totalorder %s10, 2
    // Predicated region
    $region25: #{up_forward.5} parent=5 // pred_check
      %p150 = pneg %p149
    $region26: #{up_forward.5} parent=5 // pred_check_branch
      %152 = sbr.rel (%p150) target = $region28
    $region27: #{up_forward.5} parent=5 // pred_region
      // Predicated region
      $region29: #{up_forward.5} parent=27 // pred_check
        %p153 = pneg %p30
      $region30: #{up_forward.5} parent=27 // pred_check_branch
        %155 = sbr.rel (%p153) target = $region32
      $region31: #{up_forward.5} parent=27 // pred_region
        %p156 = scmp.lt.s32.totalorder %s10, 1
        %s157 = scalar_select %p156, %s10, 1
        %s158 = smul.addr %s157, 3
        %s159 = smul.addr %s158, 4
        %s160 = scalar_lea.vmem %s0, %s159
      $region32: #{up_forward.5} parent=27 // pred_fallthru
        _
    $region28: #{up_forward.5} parent=5 // pred_fallthru
      _
    %p161 = scmp.le.s32.totalorder 1, %s10
    %p162 = scmp.lt.s32.totalorder %s10, 3
    %p163 = pnand %p161, %p162
    %p164 = pneg %p163
    // Predicated region
    $region33: #{up_forward.5} parent=5 // pred_check
      _
    $region34: #{up_forward.5} parent=5 // pred_check_branch
      %166 = sbr.rel (%p163) target = $region36
    $region35: #{up_forward.5} parent=5 // pred_region
      %s167 = ssub.s32 %s10, 1
      %p168 = scmp.lt.s32.totalorder %s15, 1
      %s169 = scalar_select %p168, %s15, 1
      %s170 = smul.addr %s169, 3
      %s171 = smul.addr %s170, 4
      %s172 = scalar_lea.vmem %s0, %s171
      %p173 = pneg %p36
      %p174 = pneg %p33
      %p175 = pneg %p57
      %p176 = pneg %p54
      %p177 = pneg %p78
      %p178 = pneg %p75
      %p179 = pneg %p99
      %p180 = pneg %p96
      %p181 = pneg %p125
      %p182 = pneg %p122
      %p183 = scmp.lt.s32.totalorder %s15, 1
      %s184 = scalar_select %p183, %s15, 1
      %s185 = smul.addr %s184, 2
      %s186 = smul.addr %s185, 4
      %s187 = scalar_lea.vmem %s4, %s186
      %p188 = scmp.lt.s32.totalorder %s15, 1
      %s189 = scalar_select %p188, %s15, 1
      %s190 = smul.addr %s189, 3
      %s191 = smul.addr %s190, 4
      %s192 = scalar_lea.vmem %s0, %s191
      %p193 = scmp.lt.s32.totalorder %s15, 1
      %s194 = scalar_select %p193, %s15, 1
      %s195 = smul.addr %s194, 2
      %s196 = smul.addr %s195, 4
      %s197 = scalar_lea.vmem %s4, %s196
      %v198 = vld [vmem:[%s1] sm:$0xff]
      %v199 = vld [vmem:[%s1 + $0x8] sm:$0xff]
      %vm200 = vcmask 15360
      %v201 = vsel %vm200, %v198, 0.0
      %v202 = vsel %vm200, %v199, 0.0
      %v203 = vadd.f32 %v201, %v202
      %v204 = vrcp.pop 512.0
      %v205 = vmul.f32 %v203, %v204
      %v206 = vmul.f32 %v205, %v205
      %208 = vrot.lane.b32.xlu0 %v206, 1
      %v209 = vpop.permute.xlu0 %208
      %v211 = vsub.f32 %v205, %v209
      %v212 = vmax.f32 %v211, 0.0
      %v213 = vld [vmem:[%s2] sm:$0xff]
      %v214 = vadd.f32 %v212, 1e-05
      %v215 = vrsqrt.pop %v214
      %217 = vrot.lane.b32.xlu0 %v215, 127
      %v218 = vpop.permute.xlu0 %217
      %v220 = vmul.f32 %v213, %v218
      %v221 = vld [vmem:[%s3] sm:$0xff]
      %v222 = vmul.f32 %v205, %v220
      %v223 = vsub.f32 %v221, %v222
      %v224 = vld [vmem:[%s192] sm:$0xff]
      %v225 = vld [vmem:[%s192 + $0x8] sm:$0xf]
      %v226 = vunpack.c.l.bf16 %v224
      %v227 = vunpack.c.h.bf16 %v224
      %v228 = vunpack.c.l.bf16 %v225
      %230 = vrot.lane.b32.xlu0 %v226, 126
      %v231 = vpop.permute.xlu0 %230
      %233 = vrot.lane.b32.xlu0 %v226, 124
      %v234 = vpop.permute.xlu0 %233
      %236 = vrot.lane.b32.xlu0 %v226, 122
      %v237 = vpop.permute.xlu0 %236
      %239 = vrot.lane.b32.xlu0 %v226, 120
      %v240 = vpop.permute.xlu0 %239
      %242 = vrot.lane.b32.xlu0 %v226, 118
      %v243 = vpop.permute.xlu0 %242
      %245 = vrot.lane.b32.xlu0 %v226, 116
      %v246 = vpop.permute.xlu0 %245
      %249 = vrot.lane.b32.xlu0 %v226, 114
      %v250 = vpop.permute.xlu0 %249
      %251 = vrot.lane.b32.xlu0 %v227, 114
      %v252 = vpop.permute.xlu0 %251
      %vm253 = vcmask 932864
      %v254 = vsel %vm253, %v250, %v252
      %256 = vrot.lane.b32.xlu0 %v227, 112
      %v257 = vpop.permute.xlu0 %256
      %259 = vrot.lane.b32.xlu0 %v227, 110
      %v260 = vpop.permute.xlu0 %259
      %262 = vrot.lane.b32.xlu0 %v227, 108
      %v263 = vpop.permute.xlu0 %262
      %265 = vrot.lane.b32.xlu0 %v227, 106
      %v266 = vpop.permute.xlu0 %265
      %268 = vrot.lane.b32.xlu0 %v227, 104
      %v269 = vpop.permute.xlu0 %268
      %271 = vrot.lane.b32.xlu0 %v227, 102
      %v272 = vpop.permute.xlu0 %271
      %275 = vrot.lane.b32.xlu0 %v227, 100
      %v276 = vpop.permute.xlu0 %275
      %277 = vrot.lane.b32.xlu0 %v228, 100
      %v278 = vpop.permute.xlu0 %277
      %vm279 = vcmask 818176
      %v280 = vsel %vm279, %v276, %v278
      %282 = vrot.lane.b32.xlu0 %v228, 98
      %v283 = vpop.permute.xlu0 %282
      %vm285 = vcmask 130048
      %v286 = vsel %vm285, %v226, %v231
      %vm287 = vcmask 261120
      %v288 = vsel %vm287, %v286, %v234
      %vm289 = vcmask 392192
      %v290 = vsel %vm289, %v288, %v237
      %vm291 = vcmask 523264
      %v292 = vsel %vm291, %v290, %v240
      %vm293 = vcmask 654336
      %v294 = vsel %vm293, %v292, %v243
      %vm295 = vcmask 785408
      %v296 = vsel %vm295, %v294, %v246
      %vm297 = vcmask 916480
      %v298 = vsel %vm297, %v296, %v254
      %v299 = vsel %vm285, %v257, %v260
      %v300 = vsel %vm287, %v299, %v263
      %v301 = vsel %vm289, %v300, %v266
      %v302 = vsel %vm291, %v301, %v269
      %v303 = vsel %vm293, %v302, %v272
      %v304 = vsel %vm295, %v303, %v280
      %v305 = vsel %vm297, %v304, %v283
      %307 = vset.pattern.permute.xlu0 0
      %308 = vperm.xlu0 %307, %v220
      %v309 = vpop.permute.xlu0 %308
      %v311 = vmul.f32 %v298, %v309
      %v312 = vmul.f32 %v305, %v309
      %314 = vset.pattern.permute.xlu0 0
      %315 = vperm.xlu0 %314, %v223
      %v316 = vpop.permute.xlu0 %315
      %v318 = vadd.f32 %v311, %v316
      %v319 = vadd.f32 %v312, %v316
      %v320 = vmax.f32 %v318, 0.0
      %v321 = vmax.f32 %v319, 0.0
      %v324 = vcombine.low %v320, %v321
      %326 = vst [vmem:[%s197] sm:$0xff] %v324
      %p327 = scmp.lt.s32.totalorder %s15, 1
      %s328 = scalar_select %p327, %s15, 1
      %s329 = smul.addr %s328, 2
      %s330 = smul.addr %s329, 4
      %s331 = scalar_lea.vmem %s4, %s330
      // Predicated region
      $region37: #{up_forward.5} parent=35 // pred_check
        %p332 = pneg %p122
      $region38: #{up_forward.5} parent=35 // pred_check_branch
        %334 = sbr.rel (%p332) target = $region40
      $region39: #{up_forward.5} parent=35 // pred_region
        _
      $region40: #{up_forward.5} parent=35 // pred_fallthru
        _
    $region36: #{up_forward.5} parent=5 // pred_fallthru
      _
    %p335 = scmp.le.s32.totalorder 2, %s10
    // Predicated region
    $region41: #{up_forward.5} parent=5 // pred_check
      %p336 = pneg %p335
    $region42: #{up_forward.5} parent=5 // pred_check_branch
      %338 = sbr.rel (%p336) target = $region44
    $region43: #{up_forward.5} parent=5 // pred_region
      %s339 = ssub.s32 %s10, 2
      // Predicated region
      $region45: #{up_forward.5} parent=43 // pred_check
        %p340 = pneg %p128
      $region46: #{up_forward.5} parent=43 // pred_check_branch
        %342 = sbr.rel (%p340) target = $region48
      $region47: #{up_forward.5} parent=43 // pred_region
        %p343 = scmp.lt.s32.totalorder %s16, 1
        %s344 = scalar_select %p343, %s16, 1
        %s345 = smul.addr %s344, 2
        %s346 = smul.addr %s345, 4
        %s347 = scalar_lea.vmem %s4, %s346
      $region48: #{up_forward.5} parent=43 // pred_fallthru
        _
    $region44: #{up_forward.5} parent=5 // pred_fallthru
      _
  $region6: #{up_forward.5} parent=0 // loop_footer
    %s14 = sadd.s32 1, %s10
  $region7: #{up_forward.5} parent=0 // loop_footer_branch
    %9 = sbr.rel target = $region3
  $region8: #{up_forward.5} parent=0 // loop_exit
    _

// kernel: up_forward.3
$region0: #{up_forward.3}
  #allocation0 [shape = 'u32[]', space=smem, size = 0x4, offset = 0x4, fixed_abs, tag = 'smem constant byte address 0x4 - core index']
  #allocation1 [shape = 'u32[144,128]{1,0:T(1,128)}', space=vmem, size = 0x12000, scoped, tag = 'internal scratch']
  %s0 = inlined_call_operand.vmem [shape: bf16[2,8,342], index: 0, kind: input, shape index: {}]
  %s1 = inlined_call_operand.vmem [shape: bf16[8,72], index: 1, kind: input, shape index: {}]
  %s2 = inlined_call_operand.vmem [shape: f32[8,1], index: 2, kind: input, shape index: {}]
  %s3 = inlined_call_operand.vmem [shape: f32[1,288], index: 3, kind: input, shape index: {}]
  %s4 = inlined_call_operand.vmem [shape: bf16[2,8,288], index: 4, kind: output, shape index: {0}]
  %s5 = inlined_call_operand.vmem [shape: f32[2,8,2], index: 5, kind: output, shape index: {1}]
  %6 = xla_tuple %s4, %s5
  %s7 = sld [smem:[#allocation0]]
  $region57: #{up_forward.3} parent=0
    _
  %s9 = ssub.s32 1, %s7
  %s10 = scalar_select 0, %s9, %s7
  loop: start=0, step=1, limit=4
  $region2: #{up_forward.3} parent=0 // loop_pre_header
    _
  $region3: #{up_forward.3} parent=0 // loop_header
    %s12 = sphi 0, %s16
    %p13 = scmp.ge.s32.totalorder %s12, 4
    %s22 = sphi 0, %s24
    %s25 = sphi 0, %s22
    %s26 = sphi 0, %s25
    %s42 = sphi 0, %s26
    %s46 = sphi 0, %s46
    %s48 = sphi 0, %s46
    %s49 = sphi 0, %s48
    %s63 = sphi 0, %s49
    %s67 = sphi 0, %s67
    %s69 = sphi 0, %s67
    %s70 = sphi 0, %s69
    %s84 = sphi 0, %s70
    %s88 = sphi 0, %s88
    %s90 = sphi 0, %s88
    %s91 = sphi 0, %s90
    %s105 = sphi 0, %s91
    %s111 = sphi 0, %s113
    %s114 = sphi 0, %s111
    %s115 = sphi 0, %s114
    %s131 = sphi 0, %s115
    %s137 = sphi 0, %s139
    %s140 = sphi 0, %s137
    %s141 = sphi 0, %s140
    %s157 = sphi 0, %s141
  $region4: #{up_forward.3} parent=0 // loop_header_branch
    %15 = sbr.rel (%p13) target = $region8
  $region5: #{up_forward.3} parent=0 // loop_body
    %s17 = ssub.s32 %s12, 1
    %s18 = ssub.s32 %s12, 2
    %s19 = sadd.s32 %s12, 1
    %s20 = ssub.s32 %s12, %s19
    %p21 = scmp.eq.s32.totalorder %s20, 0
    %s23 = sadd.s32 %s22, 1
    %s24 = scalar_select %p21, %s22, %s23
    %p27 = pneg %p21
    %p28 = scmp.eq.s32.totalorder %s12, 1
    %p29 = por %p27, %p28
    %p30 = scmp.ne.s32.totalorder %s22, %s25
    %p31 = scmp.eq.s32.totalorder %s12, 0
    %p32 = por %p30, %p31
    %p33 = scmp.ne.s32.totalorder %s22, %s25
    %p34 = scmp.eq.s32.totalorder %s17, 1
    %p35 = por %p33, %p34
    %p36 = scmp.ne.s32.totalorder %s25, %s26
    %p37 = scmp.eq.s32.totalorder %s17, 0
    %p38 = por %p36, %p37
    %p39 = scmp.ne.s32.totalorder %s25, %s26
    %p40 = scmp.eq.s32.totalorder %s18, 1
    %p41 = por %p39, %p40
    %p43 = scmp.ne.s32.totalorder %s26, %s42
    %p44 = scmp.eq.s32.totalorder %s18, 0
    %p45 = por %p43, %p44
    %s47 = sadd.s32 %s46, 1
    %p50 = scmp.eq.s32.totalorder %s12, 1
    %p51 = scmp.ne.s32.totalorder %s46, %s48
    %p52 = scmp.eq.s32.totalorder %s12, 0
    %p53 = por %p51, %p52
    %p54 = scmp.ne.s32.totalorder %s46, %s48
    %p55 = scmp.eq.s32.totalorder %s17, 1
    %p56 = por %p54, %p55
    %p57 = scmp.ne.s32.totalorder %s48, %s49
    %p58 = scmp.eq.s32.totalorder %s17, 0
    %p59 = por %p57, %p58
    %p60 = scmp.ne.s32.totalorder %s48, %s49
    %p61 = scmp.eq.s32.totalorder %s18, 1
    %p62 = por %p60, %p61
    %p64 = scmp.ne.s32.totalorder %s49, %s63
    %p65 = scmp.eq.s32.totalorder %s18, 0
    %p66 = por %p64, %p65
    %s68 = sadd.s32 %s67, 1
    %p71 = scmp.eq.s32.totalorder %s12, 1
    %p72 = scmp.ne.s32.totalorder %s67, %s69
    %p73 = scmp.eq.s32.totalorder %s12, 0
    %p74 = por %p72, %p73
    %p75 = scmp.ne.s32.totalorder %s67, %s69
    %p76 = scmp.eq.s32.totalorder %s17, 1
    %p77 = por %p75, %p76
    %p78 = scmp.ne.s32.totalorder %s69, %s70
    %p79 = scmp.eq.s32.totalorder %s17, 0
    %p80 = por %p78, %p79
    %p81 = scmp.ne.s32.totalorder %s69, %s70
    %p82 = scmp.eq.s32.totalorder %s18, 1
    %p83 = por %p81, %p82
    %p85 = scmp.ne.s32.totalorder %s70, %s84
    %p86 = scmp.eq.s32.totalorder %s18, 0
    %p87 = por %p85, %p86
    %s89 = sadd.s32 %s88, 1
    %p92 = scmp.eq.s32.totalorder %s12, 1
    %p93 = scmp.ne.s32.totalorder %s88, %s90
    %p94 = scmp.eq.s32.totalorder %s12, 0
    %p95 = por %p93, %p94
    %p96 = scmp.ne.s32.totalorder %s88, %s90
    %p97 = scmp.eq.s32.totalorder %s17, 1
    %p98 = por %p96, %p97
    %p99 = scmp.ne.s32.totalorder %s90, %s91
    %p100 = scmp.eq.s32.totalorder %s17, 0
    %p101 = por %p99, %p100
    %p102 = scmp.ne.s32.totalorder %s90, %s91
    %p103 = scmp.eq.s32.totalorder %s18, 1
    %p104 = por %p102, %p103
    %p106 = scmp.ne.s32.totalorder %s91, %s105
    %p107 = scmp.eq.s32.totalorder %s18, 0
    %p108 = por %p106, %p107
    %s109 = ssub.s32 %s12, %s19
    %p110 = scmp.eq.s32.totalorder %s109, 0
    %s112 = sadd.s32 %s111, 1
    %s113 = scalar_select %p110, %s111, %s112
    %p116 = pneg %p110
    %p117 = scmp.eq.s32.totalorder %s12, 1
    %p118 = por %p116, %p117
    %p119 = scmp.ne.s32.totalorder %s111, %s114
    %p120 = scmp.eq.s32.totalorder %s12, 0
    %p121 = por %p119, %p120
    %p122 = scmp.ne.s32.totalorder %s111, %s114
    %p123 = scmp.eq.s32.totalorder %s17, 1
    %p124 = por %p122, %p123
    %p125 = scmp.ne.s32.totalorder %s114, %s115
    %p126 = scmp.eq.s32.totalorder %s17, 0
    %p127 = por %p125, %p126
    %p128 = scmp.ne.s32.totalorder %s114, %s115
    %p129 = scmp.eq.s32.totalorder %s18, 1
    %p130 = por %p128, %p129
    %p132 = scmp.ne.s32.totalorder %s115, %s131
    %p133 = scmp.eq.s32.totalorder %s18, 0
    %p134 = por %p132, %p133
    %s135 = ssub.s32 %s12, %s19
    %p136 = scmp.eq.s32.totalorder %s135, 0
    %s138 = sadd.s32 %s137, 1
    %s139 = scalar_select %p136, %s137, %s138
    %p142 = pneg %p136
    %p143 = scmp.eq.s32.totalorder %s12, 1
    %p144 = por %p142, %p143
    %p145 = scmp.ne.s32.totalorder %s137, %s140
    %p146 = scmp.eq.s32.totalorder %s12, 0
    %p147 = por %p145, %p146
    %p148 = scmp.ne.s32.totalorder %s137, %s140
    %p149 = scmp.eq.s32.totalorder %s17, 1
    %p150 = por %p148, %p149
    %p151 = scmp.ne.s32.totalorder %s140, %s141
    %p152 = scmp.eq.s32.totalorder %s17, 0
    %p153 = por %p151, %p152
    %p154 = scmp.ne.s32.totalorder %s140, %s141
    %p155 = scmp.eq.s32.totalorder %s18, 1
    %p156 = por %p154, %p155
    %p158 = scmp.ne.s32.totalorder %s141, %s157
    %p159 = scmp.eq.s32.totalorder %s18, 0
    %p160 = por %p158, %p159
    %p161 = scmp.le.s32.totalorder 1, %s12
    %p162 = scmp.lt.s32.totalorder %s12, 3
    %p163 = pnand %p161, %p162
    %p164 = pneg %p163
    // Predicated region
    $region9: #{up_forward.3} parent=5 // pred_check
      _
    $region10: #{up_forward.3} parent=5 // pred_check_branch
      %166 = sbr.rel (%p163) target = $region12
    $region11: #{up_forward.3} parent=5 // pred_region
      %s167 = ssub.s32 %s12, 1
      // Predicated region
      $region13: #{up_forward.3} parent=11 // pred_check
        %p168 = pneg %p59
      $region14: #{up_forward.3} parent=11 // pred_check_branch
        %170 = sbr.rel (%p168) target = $region16
      $region15: #{up_forward.3} parent=11 // pred_region
        _
      $region16: #{up_forward.3} parent=11 // pred_fallthru
        _
      // Predicated region
      $region17: #{up_forward.3} parent=11 // pred_check
        %p171 = pneg %p80
      $region18: #{up_forward.3} parent=11 // pred_check_branch
        %173 = sbr.rel (%p171) target = $region20
      $region19: #{up_forward.3} parent=11 // pred_region
        _
      $region20: #{up_forward.3} parent=11 // pred_fallthru
        _
      // Predicated region
      $region21: #{up_forward.3} parent=11 // pred_check
        %p174 = pneg %p101
      $region22: #{up_forward.3} parent=11 // pred_check_branch
        %176 = sbr.rel (%p174) target = $region24
      $region23: #{up_forward.3} parent=11 // pred_region
        _
      $region24: #{up_forward.3} parent=11 // pred_fallthru
        _
    $region12: #{up_forward.3} parent=5 // pred_fallthru
      _
    %p177 = scmp.lt.s32.totalorder %s12, 2
    // Predicated region
    $region25: #{up_forward.3} parent=5 // pred_check
      %p178 = pneg %p177
    $region26: #{up_forward.3} parent=5 // pred_check_branch
      %180 = sbr.rel (%p178) target = $region28
    $region27: #{up_forward.3} parent=5 // pred_region
      // Predicated region
      $region29: #{up_forward.3} parent=27 // pred_check
        %p181 = pneg %p32
      $region30: #{up_forward.3} parent=27 // pred_check_branch
        %183 = sbr.rel (%p181) target = $region32
      $region31: #{up_forward.3} parent=27 // pred_region
        %p184 = scmp.lt.s32.totalorder %s12, 1
        %s185 = scalar_select %p184, %s12, 1
        %s186 = smul.addr %s185, 3
        %s187 = smul.addr %s186, 4
        %s188 = scalar_lea.vmem %s0, %s187
      $region32: #{up_forward.3} parent=27 // pred_fallthru
        _
    $region28: #{up_forward.3} parent=5 // pred_fallthru
      _
    %p189 = scmp.le.s32.totalorder 1, %s12
    %p190 = scmp.lt.s32.totalorder %s12, 3
    %p191 = pnand %p189, %p190
    %p192 = pneg %p191
    // Predicated region
    $region33: #{up_forward.3} parent=5 // pred_check
      _
    $region34: #{up_forward.3} parent=5 // pred_check_branch
      %194 = sbr.rel (%p191) target = $region36
    $region35: #{up_forward.3} parent=5 // pred_region
      %s195 = ssub.s32 %s12, 1
      %p196 = scmp.lt.s32.totalorder %s17, 1
      %s197 = scalar_select %p196, %s17, 1
      %s198 = smul.addr %s197, 3
      %s199 = smul.addr %s198, 4
      %s200 = scalar_lea.vmem %s0, %s199
      %p201 = pneg %p38
      %p202 = pneg %p35
      %p203 = pneg %p59
      %p204 = pneg %p56
      %p205 = pneg %p80
      %p206 = pneg %p77
      %p207 = pneg %p101
      %p208 = pneg %p98
      %p209 = pneg %p127
      %p210 = pneg %p124
      %p211 = scmp.lt.s32.totalorder %s17, 1
      %s212 = scalar_select %p211, %s17, 1
      %s213 = smul.addr %s212, 3
      %s214 = smul.addr %s213, 4
      %s215 = scalar_lea.vmem %s4, %s214
      %p216 = pneg %p153
      %p217 = pneg %p150
      %p218 = scmp.lt.s32.totalorder %s17, 1
      %s219 = scalar_select %p218, %s17, 1
      %s220 = smul.addr %s219, 8
      %s221 = scalar_lea.vmem %s5, %s220
      %p222 = scmp.lt.s32.totalorder %s17, 1
      %s223 = scalar_select %p222, %s17, 1
      %s224 = smul.addr %s223, 3
      %s225 = smul.addr %s224, 4
      %s226 = scalar_lea.vmem %s0, %s225
      %p227 = scmp.lt.s32.totalorder %s17, 1
      %s228 = scalar_select %p227, %s17, 1
      %s229 = smul.addr %s228, 3
      %s230 = smul.addr %s229, 4
      %s231 = scalar_lea.vmem %s4, %s230
      %p232 = scmp.lt.s32.totalorder %s17, 1
      %s233 = scalar_select %p232, %s17, 1
      %s234 = smul.addr %s233, 8
      %s235 = scalar_lea.vmem %s5, %s234
      %v237 = vld [vmem:[%s226] sm:$0xff]
      %v238 = vld [vmem:[%s226 + $0x8] sm:$0xf]
      %v239 = vunpack.c.l.bf16 %v237
      %v240 = vunpack.c.h.bf16 %v237
      %v241 = vunpack.c.l.bf16 %v238
      %245 = vrot.lane.b32.xlu0 %v239, 127
      %v246 = vpop.permute.xlu0 %245
      %247 = vrot.lane.b32.xlu0 %v240, 127
      %v248 = vpop.permute.xlu0 %247
      %249 = vrot.lane.b32.xlu0 %v241, 127
      %v250 = vpop.permute.xlu0 %249
      %vm251 = vcmask 1039360
      %v252 = vsel %vm251, %v246, %v248
      %v253 = vsel %vm251, %v248, %v250
      %257 = vrot.lane.b32.xlu0 %v239, 126
      %v258 = vpop.permute.xlu0 %257
      %259 = vrot.lane.b32.xlu0 %v240, 126
      %v260 = vpop.permute.xlu0 %259
      %261 = vrot.lane.b32.xlu0 %v241, 126
      %v262 = vpop.permute.xlu0 %261
      %vm263 = vcmask 1031168
      %v264 = vsel %vm263, %v258, %v260
      %v265 = vsel %vm263, %v260, %v262
      %269 = vrot.lane.b32.xlu0 %v239, 110
      %v270 = vpop.permute.xlu0 %269
      %271 = vrot.lane.b32.xlu0 %v240, 110
      %v272 = vpop.permute.xlu0 %271
      %273 = vrot.lane.b32.xlu0 %v241, 110
      %v274 = vpop.permute.xlu0 %273
      %vm275 = vcmask 900096
      %v276 = vsel %vm275, %v270, %v272
      %v277 = vsel %vm275, %v272, %v274
      %281 = vrot.lane.b32.xlu0 %v239, 109
      %v282 = vpop.permute.xlu0 %281
      %283 = vrot.lane.b32.xlu0 %v240, 109
      %v284 = vpop.permute.xlu0 %283
      %285 = vrot.lane.b32.xlu0 %v241, 109
      %v286 = vpop.permute.xlu0 %285
      %vm287 = vcmask 891904
      %v288 = vsel %vm287, %v282, %v284
      %v289 = vsel %vm287, %v284, %v286
      %293 = vrot.lane.b32.xlu0 %v239, 108
      %v294 = vpop.permute.xlu0 %293
      %295 = vrot.lane.b32.xlu0 %v240, 108
      %v296 = vpop.permute.xlu0 %295
      %297 = vrot.lane.b32.xlu0 %v241, 108
      %v298 = vpop.permute.xlu0 %297
      %vm299 = vcmask 883712
      %v300 = vsel %vm299, %v294, %v296
      %v301 = vsel %vm299, %v296, %v298
      %305 = vrot.lane.b32.xlu0 %v239, 92
      %v306 = vpop.permute.xlu0 %305
      %307 = vrot.lane.b32.xlu0 %v240, 92
      %v308 = vpop.permute.xlu0 %307
      %309 = vrot.lane.b32.xlu0 %v241, 92
      %v310 = vpop.permute.xlu0 %309
      %vm311 = vcmask 752640
      %v312 = vsel %vm311, %v306, %v308
      %v313 = vsel %vm311, %v308, %v310
      %317 = vrot.lane.b32.xlu0 %v239, 91
      %v318 = vpop.permute.xlu0 %317
      %319 = vrot.lane.b32.xlu0 %v240, 91
      %v320 = vpop.permute.xlu0 %319
      %321 = vrot.lane.b32.xlu0 %v241, 91
      %v322 = vpop.permute.xlu0 %321
      %vm323 = vcmask 744448
      %v324 = vsel %vm323, %v318, %v320
      %v325 = vsel %vm323, %v320, %v322
      %329 = vrot.lane.b32.xlu0 %v239, 90
      %v330 = vpop.permute.xlu0 %329
      %331 = vrot.lane.b32.xlu0 %v240, 90
      %v332 = vpop.permute.xlu0 %331
      %333 = vrot.lane.b32.xlu0 %v241, 90
      %v334 = vpop.permute.xlu0 %333
      %vm335 = vcmask 736256
      %v336 = vsel %vm335, %v330, %v332
      %v337 = vsel %vm335, %v332, %v334
      %v341 = vpack.c.bf16 %v252, %v239
      %v342 = vpack.c.bf16 %v253, %v240
      %v343 = vpack.c.bf16 %v250, %v241
      %v344 = vpack.c.bf16 %v276, %v264
      %v345 = vpack.c.bf16 %v277, %v265
      %v346 = vpack.c.bf16 %v274, %v262
      %v347 = vpack.c.bf16 %v300, %v288
      %v348 = vpack.c.bf16 %v301, %v289
      %v349 = vpack.c.bf16 %v298, %v286
      %v350 = vpack.c.bf16 %v324, %v312
      %v351 = vpack.c.bf16 %v325, %v313
      %v352 = vpack.c.bf16 %v322, %v310
      %v353 = vpack.c.bf16 %v336, %v336
      %v354 = vpack.c.bf16 %v337, %v337
      %v355 = vpack.c.bf16 %v334, %v334
      %v356 = vld [vmem:[%s1] sm:$0xf]
      %v357 = vld [vmem:[%s2] sm:$0xff]
      %359 = vset.pattern.permute.xlu0 0
      %360 = vperm.xlu0 %359, %v357
      %v361 = vpop.permute.xlu0 %360
      %vm363 = vcmask 588800
      %v365 = vsel %vm363, %v356, 0
      %vm367 = vcmask 1043456
      %v369 = vsel %vm367, %v353, 0
      %v372 = vsel %vm367, %v354, 0
      %v375 = vsel %vm367, %v355, 0
      %377 = vmatprep.subr.bf16.mxu0 %v342
      %378 = vmatpush1.bf16.msra.mxu0 %v341
      %379 = vmatprep.subr.bf16.mxu0 %v345
      %380 = vmatpush1.bf16.msra.mxu0 %v344
      %381 = vmatprep.subr.bf16.mxu0 %v348
      %382 = vmatpush1.bf16.msra.mxu0 %v347
      %383 = vmatprep.subr.bf16.mxu0 %v351
      %384 = vmatpush1.bf16.msra.mxu0 %v350
      %385 = vmatprep.subr.bf16.mxu0 %v372
      %386 = vmatpush1.bf16.msra.mxu0 %v369
      %387 = vmatprep.subr.bf16.mxu0 0
      %388 = vmatpush1.bf16.msra.mxu0 0
      %389 = vmatprep.subr.bf16.mxu0 0
      %390 = vmatpush1.bf16.msra.mxu0 0
      %391 = vmatprep.subr.bf16.mxu0 0
      %392 = vmatpush1.bf16.msra.mxu0 0
      %393 = vmatprep.subr.bf16.mxu0 0
      %394 = vmatpush1.bf16.msra.mxu0 0
      %395 = vmatprep.subr.bf16.mxu0 0
      %396 = vmatpush1.bf16.msra.mxu0 0
      %397 = vmatprep.subr.bf16.mxu0 0
      %398 = vmatpush1.bf16.msra.mxu0 0
      %399 = vmatprep.subr.bf16.mxu0 0
      %400 = vmatpush1.bf16.msra.mxu0 0
      %401 = vmatprep.subr.bf16.mxu0 0
      %402 = vmatpush1.bf16.msra.mxu0 0
      %403 = vmatprep.subr.bf16.mxu0 0
      %404 = vmatpush1.bf16.msra.mxu0 0
      %405 = vmatprep.subr.bf16.mxu0 0
      %406 = vmatpush1.bf16.msra.mxu0 0
      %407 = vmatprep.subr.bf16.mxu0 0
      %408 = vmatpush1.bf16.msra.mxu0 0
      %409 = vmatprep.mubr.bf16.mxu0 0
      %410 = vmatmul.mubr.bf16.gmra.mrb[0].mxu0 %v365
      %v411 = vpop.f32.mrb[0].mxu0
      %v412 = vadd.f32 %v361, %v411
      %v413 = vpop.f32.mrb[0].mxu0
      %v414 = vadd.f32 %v361, %v413
      %v415 = vpop.f32.mrb[0].mxu0
      %v416 = vpop.f32.mrb[0].mxu0
      %417 = vdwg.mxu0
      %418 = vmatprep.subr.bf16.mxu0 0
      %419 = vmatpush1.bf16.msra.mxu0 %v343
      %420 = vmatprep.subr.bf16.mxu0 0
      %421 = vmatpush1.bf16.msra.mxu0 %v346
      %422 = vmatprep.subr.bf16.mxu0 0
      %423 = vmatpush1.bf16.msra.mxu0 %v349
      %424 = vmatprep.subr.bf16.mxu0 0
      %425 = vmatpush1.bf16.msra.mxu0 %v352
      %426 = vmatprep.subr.bf16.mxu0 0
      %427 = vmatpush1.bf16.msra.mxu0 %v375
      %428 = vmatprep.subr.bf16.mxu0 0
      %429 = vmatpush1.bf16.msra.mxu0 0
      %430 = vmatprep.subr.bf16.mxu0 0
      %431 = vmatpush1.bf16.msra.mxu0 0
      %432 = vmatprep.subr.bf16.mxu0 0
      %433 = vmatpush1.bf16.msra.mxu0 0
      %434 = vmatprep.subr.bf16.mxu0 0
      %435 = vmatpush1.bf16.msra.mxu0 0
      %436 = vmatprep.subr.bf16.mxu0 0
      %437 = vmatpush1.bf16.msra.mxu0 0
      %438 = vmatprep.subr.bf16.mxu0 0
      %439 = vmatpush1.bf16.msra.mxu0 0
      %440 = vmatprep.subr.bf16.mxu0 0
      %441 = vmatpush1.bf16.msra.mxu0 0
      %442 = vmatprep.subr.bf16.mxu0 0
      %443 = vmatpush1.bf16.msra.mxu0 0
      %444 = vmatprep.subr.bf16.mxu0 0
      %445 = vmatpush1.bf16.msra.mxu0 0
      %446 = vmatprep.subr.bf16.mxu0 0
      %447 = vmatpush1.bf16.msra.mxu0 0
      %448 = vmatprep.subr.bf16.mxu0 0
      %449 = vmatpush1.bf16.msra.mxu0 0
      %450 = vmatprep.mubr.bf16.mxu0 0
      %451 = vmatmul.mubr.bf16.gmra.mrb[0].mxu0 %v365
      %v452 = vpop.f32.mrb[0].mxu0
      %v453 = vadd.f32 %v361, %v452
      %v454 = vpop.f32.mrb[0].mxu0
      %v455 = vpop.f32.mrb[0].mxu0
      %v456 = vpop.f32.mrb[0].mxu0
      %457 = vdwg.mxu0
      %v458 = vld [vmem:[%s3] sm:$0x7]
      %v460 = vlaneseq
      %v461 = vshrl.u32 %v460, 7
      %v462 = vsub.s32 0, %v461
      %v463 = vrot.slane %v458, %v462
      %v464 = vlaneseq
      %v465 = vshrl.u32 %v464, 7
      %v466 = vsub.s32 1, %v465
      %v467 = vrot.slane %v458, %v466
      %v468 = vlaneseq
      %v469 = vshrl.u32 %v468, 7
      %v470 = vsub.s32 2, %v469
      %v471 = vrot.slane %v458, %v470
      %v475 = vmul.f32 %v412, %v463
      %v476 = vmul.f32 %v414, %v467
      %v477 = vmul.f32 %v453, %v471
      %v478 = vpack.c.bf16 %v475, %v475
      %v479 = vpack.c.bf16 %v476, %v476
      %v480 = vpack.c.bf16 %v477, %v477
      %v484 = vunpack.c.l.b16 %v478
      %v485 = vunpack.c.l.b16 %v479
      %v486 = vunpack.c.l.b16 %v480
      %v487 = vpack.c.b16 %v485, %v484
      %v488 = vpack.c.b16 %v486, %v486
      %491 = vst [vmem:[%s231] sm:$0xff] %v487
      %vm492 = vcmask 257024
      %493 = vst.msk [vmem:[%s231 + $0x8] sm:$0xf] %vm492, %v488
      %v494 = vadd.f32 %v475, %v476
      %vm495 = vcmask 261120
      %v496 = vsel %vm495, %v477, 0.0
      %v497 = vadd.f32 %v494, %v496
      %498 = vadd.xlane.f32.xlu0 %v497
      %v499 = vpop.xlane.xlu0 %498
      %v500 = vmul.f32 %v475, %v475
      %v501 = vmul.f32 %v476, %v476
      %v502 = vmul.f32 %v477, %v477
      %v503 = vadd.f32 %v500, %v501
      %v504 = vsel %vm495, %v502, 0.0
      %v505 = vadd.f32 %v503, %v504
      %506 = vadd.xlane.f32.xlu0 %v505
      %v507 = vpop.xlane.xlu0 %506
      %vm508 = vcmask 7168
      %v509 = vsel %vm508, %v499, %v507
      %vm510 = vcmask 15360
      %511 = vst.msk [vmem:[%s235] sm:$0xff] %vm510, %v509
      %p512 = scmp.lt.s32.totalorder %s17, 1
      %s513 = scalar_select %p512, %s17, 1
      %s514 = smul.addr %s513, 3
      %s515 = smul.addr %s514, 4
      %s516 = scalar_lea.vmem %s4, %s515
      %p517 = scmp.lt.s32.totalorder %s17, 1
      %s518 = scalar_select %p517, %s17, 1
      %s519 = smul.addr %s518, 8
      %s520 = scalar_lea.vmem %s5, %s519
      // Predicated region
      $region37: #{up_forward.3} parent=35 // pred_check
        %p521 = pneg %p124
      $region38: #{up_forward.3} parent=35 // pred_check_branch
        %523 = sbr.rel (%p521) target = $region40
      $region39: #{up_forward.3} parent=35 // pred_region
        _
      $region40: #{up_forward.3} parent=35 // pred_fallthru
        _
      // Predicated region
      $region41: #{up_forward.3} parent=35 // pred_check
        %p524 = pneg %p150
      $region42: #{up_forward.3} parent=35 // pred_check_branch
        %526 = sbr.rel (%p524) target = $region44
      $region43: #{up_forward.3} parent=35 // pred_region
        _
      $region44: #{up_forward.3} parent=35 // pred_fallthru
        _
    $region36: #{up_forward.3} parent=5 // pred_fallthru
      _
    %p527 = scmp.le.s32.totalorder 2, %s12
    // Predicated region
    $region45: #{up_forward.3} parent=5 // pred_check
      %p528 = pneg %p527
    $region46: #{up_forward.3} parent=5 // pred_check_branch
      %530 = sbr.rel (%p528) target = $region48
    $region47: #{up_forward.3} parent=5 // pred_region
      %s531 = ssub.s32 %s12, 2
      // Predicated region
      $region49: #{up_forward.3} parent=47 // pred_check
        %p532 = pneg %p130
      $region50: #{up_forward.3} parent=47 // pred_check_branch
        %534 = sbr.rel (%p532) target = $region52
      $region51: #{up_forward.3} parent=47 // pred_region
        %p535 = scmp.lt.s32.totalorder %s18, 1
        %s536 = scalar_select %p535, %s18, 1
        %s537 = smul.addr %s536, 3
        %s538 = smul.addr %s537, 4
        %s539 = scalar_lea.vmem %s4, %s538
      $region52: #{up_forward.3} parent=47 // pred_fallthru
        _
      // Predicated region
      $region53: #{up_forward.3} parent=47 // pred_check
        %p540 = pneg %p156
      $region54: #{up_forward.3} parent=47 // pred_check_branch
        %542 = sbr.rel (%p540) target = $region56
      $region55: #{up_forward.3} parent=47 // pred_region
        %p543 = scmp.lt.s32.totalorder %s18, 1
        %s544 = scalar_select %p543, %s18, 1
        %s545 = smul.addr %s544, 8
        %s546 = scalar_lea.vmem %s5, %s545
      $region56: #{up_forward.3} parent=47 // pred_fallthru
        _
    $region48: #{up_forward.3} parent=5 // pred_fallthru
      _
  $region6: #{up_forward.3} parent=0 // loop_footer
    %s16 = sadd.s32 1, %s12
  $region7: #{up_forward.3} parent=0 // loop_footer_branch
    %11 = sbr.rel target = $region3
  $region8: #{up_forward.3} parent=0 // loop_exit
    _

// kernel: up_forward.4
$region0: #{up_forward.4}
  #allocation0 [shape = 'u32[]', space=smem, size = 0x4, offset = 0x4, fixed_abs, tag = 'smem constant byte address 0x4 - core index']
  #allocation1 [shape = 'u32[144,128]{1,0:T(1,128)}', space=vmem, size = 0x12000, scoped, tag = 'internal scratch']
  #allocation2 [shape = 'f32[8,342]{1,0:T(8,128)}', space=vmem, size = 0x3000, scoped, tag = 'scratch operand']
  %s0 = inlined_call_operand.vmem [shape: bf16[2,8,288], index: 0, kind: input, shape index: {}]
  %s1 = inlined_call_operand.vmem [shape: f32[2,8,2], index: 1, kind: input, shape index: {}]
  %s2 = inlined_call_operand.vmem [shape: f32[8,1], index: 2, kind: input, shape index: {}]
  %s3 = inlined_call_operand.vmem [shape: f32[8,1], index: 3, kind: input, shape index: {}]
  %s4 = inlined_call_operand.vmem [shape: bf16[8,72], index: 4, kind: input, shape index: {}]
  %s5 = inlined_call_operand.vmem [shape: f32[8,1], index: 5, kind: input, shape index: {}]
  %s6 = inlined_call_operand.vmem [shape: f32[1,288], index: 6, kind: input, shape index: {}]
  %s7 = inlined_call_operand.vmem [shape: bf16[2,8,288], index: 7, kind: output, shape index: {0}]
  %s8 = inlined_call_operand.vmem [shape: f32[2,8,2], index: 8, kind: output, shape index: {1}]
  %9 = xla_tuple %s7, %s8
  %s10 = sld [smem:[#allocation0]]
  $region69: #{up_forward.4} parent=0
    _
  %s12 = ssub.s32 1, %s10
  %s13 = scalar_select 0, %s12, %s10
  loop: start=0, step=1, limit=4
  $region2: #{up_forward.4} parent=0 // loop_pre_header
    _
  $region3: #{up_forward.4} parent=0 // loop_header
    %s15 = sphi 0, %s19
    %p16 = scmp.ge.s32.totalorder %s15, 4
    %s25 = sphi 0, %s27
    %s28 = sphi 0, %s25
    %s29 = sphi 0, %s28
    %s45 = sphi 0, %s29
    %s49 = sphi 0, %s49
    %s51 = sphi 0, %s49
    %s52 = sphi 0, %s51
    %s66 = sphi 0, %s52
    %s70 = sphi 0, %s70
    %s72 = sphi 0, %s70
    %s73 = sphi 0, %s72
    %s87 = sphi 0, %s73
    %s91 = sphi 0, %s91
    %s93 = sphi 0, %s91
    %s94 = sphi 0, %s93
    %s108 = sphi 0, %s94
    %s112 = sphi 0, %s112
    %s114 = sphi 0, %s112
    %s115 = sphi 0, %s114
    %s129 = sphi 0, %s115
    %s133 = sphi 0, %s133
    %s135 = sphi 0, %s133
    %s136 = sphi 0, %s135
    %s150 = sphi 0, %s136
    %s154 = sphi 0, %s154
    %s156 = sphi 0, %s154
    %s157 = sphi 0, %s156
    %s171 = sphi 0, %s157
    %s177 = sphi 0, %s179
    %s180 = sphi 0, %s177
    %s181 = sphi 0, %s180
    %s197 = sphi 0, %s181
    %s203 = sphi 0, %s205
    %s206 = sphi 0, %s203
    %s207 = sphi 0, %s206
    %s223 = sphi 0, %s207
  $region4: #{up_forward.4} parent=0 // loop_header_branch
    %18 = sbr.rel (%p16) target = $region8
  $region5: #{up_forward.4} parent=0 // loop_body
    %s20 = ssub.s32 %s15, 1
    %s21 = ssub.s32 %s15, 2
    %s22 = sadd.s32 %s15, 1
    %s23 = ssub.s32 %s15, %s22
    %p24 = scmp.eq.s32.totalorder %s23, 0
    %s26 = sadd.s32 %s25, 1
    %s27 = scalar_select %p24, %s25, %s26
    %p30 = pneg %p24
    %p31 = scmp.eq.s32.totalorder %s15, 1
    %p32 = por %p30, %p31
    %p33 = scmp.ne.s32.totalorder %s25, %s28
    %p34 = scmp.eq.s32.totalorder %s15, 0
    %p35 = por %p33, %p34
    %p36 = scmp.ne.s32.totalorder %s25, %s28
    %p37 = scmp.eq.s32.totalorder %s20, 1
    %p38 = por %p36, %p37
    %p39 = scmp.ne.s32.totalorder %s28, %s29
    %p40 = scmp.eq.s32.totalorder %s20, 0
    %p41 = por %p39, %p40
    %p42 = scmp.ne.s32.totalorder %s28, %s29
    %p43 = scmp.eq.s32.totalorder %s21, 1
    %p44 = por %p42, %p43
    %p46 = scmp.ne.s32.totalorder %s29, %s45
    %p47 = scmp.eq.s32.totalorder %s21, 0
    %p48 = por %p46, %p47
    %s50 = sadd.s32 %s49, 1
    %p53 = scmp.eq.s32.totalorder %s15, 1
    %p54 = scmp.ne.s32.totalorder %s49, %s51
    %p55 = scmp.eq.s32.totalorder %s15, 0
    %p56 = por %p54, %p55
    %p57 = scmp.ne.s32.totalorder %s49, %s51
    %p58 = scmp.eq.s32.totalorder %s20, 1
    %p59 = por %p57, %p58
    %p60 = scmp.ne.s32.totalorder %s51, %s52
    %p61 = scmp.eq.s32.totalorder %s20, 0
    %p62 = por %p60, %p61
    %p63 = scmp.ne.s32.totalorder %s51, %s52
    %p64 = scmp.eq.s32.totalorder %s21, 1
    %p65 = por %p63, %p64
    %p67 = scmp.ne.s32.totalorder %s52, %s66
    %p68 = scmp.eq.s32.totalorder %s21, 0
    %p69 = por %p67, %p68
    %s71 = sadd.s32 %s70, 1
    %p74 = scmp.eq.s32.totalorder %s15, 1
    %p75 = scmp.ne.s32.totalorder %s70, %s72
    %p76 = scmp.eq.s32.totalorder %s15, 0
    %p77 = por %p75, %p76
    %p78 = scmp.ne.s32.totalorder %s70, %s72
    %p79 = scmp.eq.s32.totalorder %s20, 1
    %p80 = por %p78, %p79
    %p81 = scmp.ne.s32.totalorder %s72, %s73
    %p82 = scmp.eq.s32.totalorder %s20, 0
    %p83 = por %p81, %p82
    %p84 = scmp.ne.s32.totalorder %s72, %s73
    %p85 = scmp.eq.s32.totalorder %s21, 1
    %p86 = por %p84, %p85
    %p88 = scmp.ne.s32.totalorder %s73, %s87
    %p89 = scmp.eq.s32.totalorder %s21, 0
    %p90 = por %p88, %p89
    %s92 = sadd.s32 %s91, 1
    %p95 = scmp.eq.s32.totalorder %s15, 1
    %p96 = scmp.ne.s32.totalorder %s91, %s93
    %p97 = scmp.eq.s32.totalorder %s15, 0
    %p98 = por %p96, %p97
    %p99 = scmp.ne.s32.totalorder %s91, %s93
    %p100 = scmp.eq.s32.totalorder %s20, 1
    %p101 = por %p99, %p100
    %p102 = scmp.ne.s32.totalorder %s93, %s94
    %p103 = scmp.eq.s32.totalorder %s20, 0
    %p104 = por %p102, %p103
    %p105 = scmp.ne.s32.totalorder %s93, %s94
    %p106 = scmp.eq.s32.totalorder %s21, 1
    %p107 = por %p105, %p106
    %p109 = scmp.ne.s32.totalorder %s94, %s108
    %p110 = scmp.eq.s32.totalorder %s21, 0
    %p111 = por %p109, %p110
    %s113 = sadd.s32 %s112, 1
    %p116 = scmp.eq.s32.totalorder %s15, 1
    %p117 = scmp.ne.s32.totalorder %s112, %s114
    %p118 = scmp.eq.s32.totalorder %s15, 0
    %p119 = por %p117, %p118
    %p120 = scmp.ne.s32.totalorder %s112, %s114
    %p121 = scmp.eq.s32.totalorder %s20, 1
    %p122 = por %p120, %p121
    %p123 = scmp.ne.s32.totalorder %s114, %s115
    %p124 = scmp.eq.s32.totalorder %s20, 0
    %p125 = por %p123, %p124
    %p126 = scmp.ne.s32.totalorder %s114, %s115
    %p127 = scmp.eq.s32.totalorder %s21, 1
    %p128 = por %p126, %p127
    %p130 = scmp.ne.s32.totalorder %s115, %s129
    %p131 = scmp.eq.s32.totalorder %s21, 0
    %p132 = por %p130, %p131
    %s134 = sadd.s32 %s133, 1
    %p137 = scmp.eq.s32.totalorder %s15, 1
    %p138 = scmp.ne.s32.totalorder %s133, %s135
    %p139 = scmp.eq.s32.totalorder %s15, 0
    %p140 = por %p138, %p139
    %p141 = scmp.ne.s32.totalorder %s133, %s135
    %p142 = scmp.eq.s32.totalorder %s20, 1
    %p143 = por %p141, %p142
    %p144 = scmp.ne.s32.totalorder %s135, %s136
    %p145 = scmp.eq.s32.totalorder %s20, 0
    %p146 = por %p144, %p145
    %p147 = scmp.ne.s32.totalorder %s135, %s136
    %p148 = scmp.eq.s32.totalorder %s21, 1
    %p149 = por %p147, %p148
    %p151 = scmp.ne.s32.totalorder %s136, %s150
    %p152 = scmp.eq.s32.totalorder %s21, 0
    %p153 = por %p151, %p152
    %s155 = sadd.s32 %s154, 1
    %p158 = scmp.eq.s32.totalorder %s15, 1
    %p159 = scmp.ne.s32.totalorder %s154, %s156
    %p160 = scmp.eq.s32.totalorder %s15, 0
    %p161 = por %p159, %p160
    %p162 = scmp.ne.s32.totalorder %s154, %s156
    %p163 = scmp.eq.s32.totalorder %s20, 1
    %p164 = por %p162, %p163
    %p165 = scmp.ne.s32.totalorder %s156, %s157
    %p166 = scmp.eq.s32.totalorder %s20, 0
    %p167 = por %p165, %p166
    %p168 = scmp.ne.s32.totalorder %s156, %s157
    %p169 = scmp.eq.s32.totalorder %s21, 1
    %p170 = por %p168, %p169
    %p172 = scmp.ne.s32.totalorder %s157, %s171
    %p173 = scmp.eq.s32.totalorder %s21, 0
    %p174 = por %p172, %p173
    %s175 = ssub.s32 %s15, %s22
    %p176 = scmp.eq.s32.totalorder %s175, 0
    %s178 = sadd.s32 %s177, 1
    %s179 = scalar_select %p176, %s177, %s178
    %p182 = pneg %p176
    %p183 = scmp.eq.s32.totalorder %s15, 1
    %p184 = por %p182, %p183
    %p185 = scmp.ne.s32.totalorder %s177, %s180
    %p186 = scmp.eq.s32.totalorder %s15, 0
    %p187 = por %p185, %p186
    %p188 = scmp.ne.s32.totalorder %s177, %s180
    %p189 = scmp.eq.s32.totalorder %s20, 1
    %p190 = por %p188, %p189
    %p191 = scmp.ne.s32.totalorder %s180, %s181
    %p192 = scmp.eq.s32.totalorder %s20, 0
    %p193 = por %p191, %p192
    %p194 = scmp.ne.s32.totalorder %s180, %s181
    %p195 = scmp.eq.s32.totalorder %s21, 1
    %p196 = por %p194, %p195
    %p198 = scmp.ne.s32.totalorder %s181, %s197
    %p199 = scmp.eq.s32.totalorder %s21, 0
    %p200 = por %p198, %p199
    %s201 = ssub.s32 %s15, %s22
    %p202 = scmp.eq.s32.totalorder %s201, 0
    %s204 = sadd.s32 %s203, 1
    %s205 = scalar_select %p202, %s203, %s204
    %p208 = pneg %p202
    %p209 = scmp.eq.s32.totalorder %s15, 1
    %p210 = por %p208, %p209
    %p211 = scmp.ne.s32.totalorder %s203, %s206
    %p212 = scmp.eq.s32.totalorder %s15, 0
    %p213 = por %p211, %p212
    %p214 = scmp.ne.s32.totalorder %s203, %s206
    %p215 = scmp.eq.s32.totalorder %s20, 1
    %p216 = por %p214, %p215
    %p217 = scmp.ne.s32.totalorder %s206, %s207
    %p218 = scmp.eq.s32.totalorder %s20, 0
    %p219 = por %p217, %p218
    %p220 = scmp.ne.s32.totalorder %s206, %s207
    %p221 = scmp.eq.s32.totalorder %s21, 1
    %p222 = por %p220, %p221
    %p224 = scmp.ne.s32.totalorder %s207, %s223
    %p225 = scmp.eq.s32.totalorder %s21, 0
    %p226 = por %p224, %p225
    %p227 = scmp.le.s32.totalorder 1, %s15
    %p228 = scmp.lt.s32.totalorder %s15, 3
    %p229 = pnand %p227, %p228
    %p230 = pneg %p229
    // Predicated region
    $region9: #{up_forward.4} parent=5 // pred_check
      _
    $region10: #{up_forward.4} parent=5 // pred_check_branch
      %232 = sbr.rel (%p229) target = $region12
    $region11: #{up_forward.4} parent=5 // pred_region
      %s233 = ssub.s32 %s15, 1
      // Predicated region
      $region13: #{up_forward.4} parent=11 // pred_check
        %p234 = pneg %p62
      $region14: #{up_forward.4} parent=11 // pred_check_branch
        %236 = sbr.rel (%p234) target = $region16
      $region15: #{up_forward.4} parent=11 // pred_region
        _
      $region16: #{up_forward.4} parent=11 // pred_fallthru
        _
      // Predicated region
      $region17: #{up_forward.4} parent=11 // pred_check
        %p237 = pneg %p83
      $region18: #{up_forward.4} parent=11 // pred_check_branch
        %239 = sbr.rel (%p237) target = $region20
      $region19: #{up_forward.4} parent=11 // pred_region
        _
      $region20: #{up_forward.4} parent=11 // pred_fallthru
        _
      // Predicated region
      $region21: #{up_forward.4} parent=11 // pred_check
        %p240 = pneg %p104
      $region22: #{up_forward.4} parent=11 // pred_check_branch
        %242 = sbr.rel (%p240) target = $region24
      $region23: #{up_forward.4} parent=11 // pred_region
        _
      $region24: #{up_forward.4} parent=11 // pred_fallthru
        _
      // Predicated region
      $region25: #{up_forward.4} parent=11 // pred_check
        %p243 = pneg %p125
      $region26: #{up_forward.4} parent=11 // pred_check_branch
        %245 = sbr.rel (%p243) target = $region28
      $region27: #{up_forward.4} parent=11 // pred_region
        _
      $region28: #{up_forward.4} parent=11 // pred_fallthru
        _
      // Predicated region
      $region29: #{up_forward.4} parent=11 // pred_check
        %p246 = pneg %p146
      $region30: #{up_forward.4} parent=11 // pred_check_branch
        %248 = sbr.rel (%p246) target = $region32
      $region31: #{up_forward.4} parent=11 // pred_region
        _
      $region32: #{up_forward.4} parent=11 // pred_fallthru
        _
      // Predicated region
      $region33: #{up_forward.4} parent=11 // pred_check
        %p249 = pneg %p167
      $region34: #{up_forward.4} parent=11 // pred_check_branch
        %251 = sbr.rel (%p249) target = $region36
      $region35: #{up_forward.4} parent=11 // pred_region
        _
      $region36: #{up_forward.4} parent=11 // pred_fallthru
        _
    $region12: #{up_forward.4} parent=5 // pred_fallthru
      _
    %p252 = scmp.lt.s32.totalorder %s15, 2
    // Predicated region
    $region37: #{up_forward.4} parent=5 // pred_check
      %p253 = pneg %p252
    $region38: #{up_forward.4} parent=5 // pred_check_branch
      %255 = sbr.rel (%p253) target = $region40
    $region39: #{up_forward.4} parent=5 // pred_region
      // Predicated region
      $region41: #{up_forward.4} parent=39 // pred_check
        %p256 = pneg %p35
      $region42: #{up_forward.4} parent=39 // pred_check_branch
        %258 = sbr.rel (%p256) target = $region44
      $region43: #{up_forward.4} parent=39 // pred_region
        %p259 = scmp.lt.s32.totalorder %s15, 1
        %s260 = scalar_select %p259, %s15, 1
        %s261 = smul.addr %s260, 3
        %s262 = smul.addr %s261, 4
        %s263 = scalar_lea.vmem %s0, %s262
      $region44: #{up_forward.4} parent=39 // pred_fallthru
        _
    $region40: #{up_forward.4} parent=5 // pred_fallthru
      _
    %p264 = scmp.le.s32.totalorder 1, %s15
    %p265 = scmp.lt.s32.totalorder %s15, 3
    %p266 = pnand %p264, %p265
    %p267 = pneg %p266
    // Predicated region
    $region45: #{up_forward.4} parent=5 // pred_check
      _
    $region46: #{up_forward.4} parent=5 // pred_check_branch
      %269 = sbr.rel (%p266) target = $region48
    $region47: #{up_forward.4} parent=5 // pred_region
      %s270 = ssub.s32 %s15, 1
      %p271 = scmp.lt.s32.totalorder %s20, 1
      %s272 = scalar_select %p271, %s20, 1
      %s273 = smul.addr %s272, 3
      %s274 = smul.addr %s273, 4
      %s275 = scalar_lea.vmem %s0, %s274
      %p276 = pneg %p41
      %p277 = pneg %p38
      %p278 = pneg %p62
      %p279 = pneg %p59
      %p280 = pneg %p83
      %p281 = pneg %p80
      %p282 = pneg %p104
      %p283 = pneg %p101
      %p284 = pneg %p125
      %p285 = pneg %p122
      %p286 = pneg %p146
      %p287 = pneg %p143
      %p288 = pneg %p167
      %p289 = pneg %p164
      %p290 = pneg %p193
      %p291 = pneg %p190
      %p292 = scmp.lt.s32.totalorder %s20, 1
      %s293 = scalar_select %p292, %s20, 1
      %s294 = smul.addr %s293, 3
      %s295 = smul.addr %s294, 4
      %s296 = scalar_lea.vmem %s7, %s295
      %p297 = pneg %p219
      %p298 = pneg %p216
      %p299 = scmp.lt.s32.totalorder %s20, 1
      %s300 = scalar_select %p299, %s20, 1
      %s301 = smul.addr %s300, 8
      %s302 = scalar_lea.vmem %s8, %s301
      %p303 = scmp.lt.s32.totalorder %s20, 1
      %s304 = scalar_select %p303, %s20, 1
      %s305 = smul.addr %s304, 3
      %s306 = smul.addr %s305, 4
      %s307 = scalar_lea.vmem %s0, %s306
      %p308 = scmp.lt.s32.totalorder %s20, 1
      %s309 = scalar_select %p308, %s20, 1
      %s310 = smul.addr %s309, 3
      %s311 = smul.addr %s310, 4
      %s312 = scalar_lea.vmem %s7, %s311
      %p313 = scmp.lt.s32.totalorder %s20, 1
      %s314 = scalar_select %p313, %s20, 1
      %s315 = smul.addr %s314, 8
      %s316 = scalar_lea.vmem %s8, %s315
      %v318 = vld [vmem:[%s1] sm:$0xff]
      %v319 = vld [vmem:[%s1 + $0x8] sm:$0xff]
      %vm320 = vcmask 15360
      %v321 = vsel %vm320, %v318, 0.0
      %v322 = vsel %vm320, %v319, 0.0
      %v323 = vadd.f32 %v321, %v322
      %v324 = vrcp.pop 512.0
      %v325 = vmul.f32 %v323, %v324
      %v326 = vmul.f32 %v325, %v325
      %328 = vrot.lane.b32.xlu0 %v326, 1
      %v329 = vpop.permute.xlu0 %328
      %v331 = vsub.f32 %v325, %v329
      %v332 = vmax.f32 %v331, 0.0
      %v333 = vld [vmem:[%s2] sm:$0xff]
      %v334 = vadd.f32 %v332, 1e-05
      %v335 = vrsqrt.pop %v334
      %337 = vrot.lane.b32.xlu0 %v335, 127
      %v338 = vpop.permute.xlu0 %337
      %v340 = vmul.f32 %v333, %v338
      %v341 = vld [vmem:[%s3] sm:$0xff]
      %v342 = vmul.f32 %v325, %v340
      %v343 = vsub.f32 %v341, %v342
      %v344 = vld [vmem:[%s307] sm:$0xff]
      %v345 = vld [vmem:[%s307 + $0x8] sm:$0xf]
      %v346 = vunpack.c.l.bf16 %v344
      %v347 = vunpack.c.h.bf16 %v344
      %v348 = vunpack.c.l.bf16 %v345
      %350 = vset.pattern.permute.xlu0 0
      %351 = vperm.xlu0 %350, %v340
      %v352 = vpop.permute.xlu0 %351
      %v354 = vmul.f32 %v346, %v352
      %v355 = vmul.f32 %v347, %v352
      %v356 = vmul.f32 %v348, %v352
      %358 = vset.pattern.permute.xlu0 0
      %359 = vperm.xlu0 %358, %v343
      %v360 = vpop.permute.xlu0 %359
      %v362 = vadd.f32 %v354, %v360
      %v363 = vadd.f32 %v355, %v360
      %v364 = vadd.f32 %v356, %v360
      %v365 = vmax.f32 %v362, 0.0
      %v366 = vmax.f32 %v363, 0.0
      %v367 = vmax.f32 %v364, 0.0
      %v368 = vld [vmem:[%s6] sm:$0x7]
      %v370 = vlaneseq
      %v371 = vshrl.u32 %v370, 7
      %v372 = vsub.s32 0, %v371
      %v373 = vrot.slane %v368, %v372
      %v374 = vlaneseq
      %v375 = vshrl.u32 %v374, 7
      %v376 = vsub.s32 1, %v375
      %v377 = vrot.slane %v368, %v376
      %v378 = vlaneseq
      %v379 = vshrl.u32 %v378, 7
      %v380 = vsub.s32 2, %v379
      %v381 = vrot.slane %v368, %v380
      %v385 = vmul.f32 %v365, %v373
      %v386 = vmul.f32 %v366, %v377
      %v387 = vmul.f32 %v367, %v381
      %vm388 = vcmask 154624
      %389 = vst.msk [vmem:[#allocation2] sm:$0xff] %vm388, 0.0
      %vm390 = vcmask 703896
      %391 = vst.msk [vmem:[#allocation2 + $0x10] sm:$0xff] %vm390, 0.0
      %395 = vrot.lane.b32.xlu0 %v385, 19
      %v396 = vpop.permute.xlu0 %395
      %397 = vrot.lane.b32.xlu0 %v386, 19
      %v398 = vpop.permute.xlu0 %397
      %399 = vrot.lane.b32.xlu0 %v387, 19
      %v400 = vpop.permute.xlu0 %399
      %v401 = vsel %vm388, %v396, %v398
      %v402 = vsel %vm388, %v398, %v400
      %vm406 = vcmask 1047704
      %407 = vst.msk [vmem:[#allocation2] sm:$0xff] %vm406, %v396
      %408 = vst [vmem:[#allocation2 + $0x8] sm:$0xff] %v401
      %vm409 = vcmask 416768
      %410 = vst.msk [vmem:[#allocation2 + $0x10] sm:$0xff] %vm409, %v402
      %v411 = vld [vmem:[#allocation2] sm:$0xff]
      %v412 = vld [vmem:[#allocation2 + $0x8] sm:$0xff]
      %v413 = vld [vmem:[#allocation2 + $0x10] sm:$0xff]
      %417 = vrot.lane.b32.xlu0 %v411, 127
      %v418 = vpop.permute.xlu0 %417
      %419 = vrot.lane.b32.xlu0 %v412, 127
      %v420 = vpop.permute.xlu0 %419
      %421 = vrot.lane.b32.xlu0 %v413, 127
      %v422 = vpop.permute.xlu0 %421
      %vm423 = vcmask 1039360
      %v424 = vsel %vm423, %v418, %v420
      %v425 = vsel %vm423, %v420, %v422
      %429 = vrot.lane.b32.xlu0 %v411, 126
      %v430 = vpop.permute.xlu0 %429
      %431 = vrot.lane.b32.xlu0 %v412, 126
      %v432 = vpop.permute.xlu0 %431
      %433 = vrot.lane.b32.xlu0 %v413, 126
      %v434 = vpop.permute.xlu0 %433
      %vm435 = vcmask 1031168
      %v436 = vsel %vm435, %v430, %v432
      %v437 = vsel %vm435, %v432, %v434
      %441 = vrot.lane.b32.xlu0 %v411, 110
      %v442 = vpop.permute.xlu0 %441
      %443 = vrot.lane.b32.xlu0 %v412, 110
      %v444 = vpop.permute.xlu0 %443
      %445 = vrot.lane.b32.xlu0 %v413, 110
      %v446 = vpop.permute.xlu0 %445
      %vm447 = vcmask 900096
      %v448 = vsel %vm447, %v442, %v444
      %v449 = vsel %vm447, %v444, %v446
      %453 = vrot.lane.b32.xlu0 %v411, 109
      %v454 = vpop.permute.xlu0 %453
      %455 = vrot.lane.b32.xlu0 %v412, 109
      %v456 = vpop.permute.xlu0 %455
      %457 = vrot.lane.b32.xlu0 %v413, 109
      %v458 = vpop.permute.xlu0 %457
      %vm459 = vcmask 891904
      %v460 = vsel %vm459, %v454, %v456
      %v461 = vsel %vm459, %v456, %v458
      %465 = vrot.lane.b32.xlu0 %v411, 108
      %v466 = vpop.permute.xlu0 %465
      %467 = vrot.lane.b32.xlu0 %v412, 108
      %v468 = vpop.permute.xlu0 %467
      %469 = vrot.lane.b32.xlu0 %v413, 108
      %v470 = vpop.permute.xlu0 %469
      %vm471 = vcmask 883712
      %v472 = vsel %vm471, %v466, %v468
      %v473 = vsel %vm471, %v468, %v470
      %477 = vrot.lane.b32.xlu0 %v411, 92
      %v478 = vpop.permute.xlu0 %477
      %479 = vrot.lane.b32.xlu0 %v412, 92
      %v480 = vpop.permute.xlu0 %479
      %481 = vrot.lane.b32.xlu0 %v413, 92
      %v482 = vpop.permute.xlu0 %481
      %vm483 = vcmask 752640
      %v484 = vsel %vm483, %v478, %v480
      %v485 = vsel %vm483, %v480, %v482
      %489 = vrot.lane.b32.xlu0 %v411, 91
      %v490 = vpop.permute.xlu0 %489
      %491 = vrot.lane.b32.xlu0 %v412, 91
      %v492 = vpop.permute.xlu0 %491
      %493 = vrot.lane.b32.xlu0 %v413, 91
      %v494 = vpop.permute.xlu0 %493
      %vm495 = vcmask 744448
      %v496 = vsel %vm495, %v490, %v492
      %v497 = vsel %vm495, %v492, %v494
      %501 = vrot.lane.b32.xlu0 %v411, 90
      %v502 = vpop.permute.xlu0 %501
      %503 = vrot.lane.b32.xlu0 %v412, 90
      %v504 = vpop.permute.xlu0 %503
      %505 = vrot.lane.b32.xlu0 %v413, 90
      %v506 = vpop.permute.xlu0 %505
      %vm507 = vcmask 736256
      %v508 = vsel %vm507, %v502, %v504
      %v509 = vsel %vm507, %v504, %v506
      %v513 = vpack.c.bf16 %v424, %v411
      %v514 = vpack.c.bf16 %v425, %v412
      %v515 = vpack.c.bf16 %v422, %v413
      %v516 = vpack.c.bf16 %v448, %v436
      %v517 = vpack.c.bf16 %v449, %v437
      %v518 = vpack.c.bf16 %v446, %v434
      %v519 = vpack.c.bf16 %v472, %v460
      %v520 = vpack.c.bf16 %v473, %v461
      %v521 = vpack.c.bf16 %v470, %v458
      %v522 = vpack.c.bf16 %v496, %v484
      %v523 = vpack.c.bf16 %v497, %v485
      %v524 = vpack.c.bf16 %v494, %v482
      %v525 = vpack.c.bf16 %v508, %v508
      %v526 = vpack.c.bf16 %v509, %v509
      %v527 = vpack.c.bf16 %v506, %v506
      %v528 = vld [vmem:[%s4] sm:$0xf]
      %v529 = vld [vmem:[%s5] sm:$0xff]
      %531 = vset.pattern.permute.xlu0 0
      %532 = vperm.xlu0 %531, %v529
      %v533 = vpop.permute.xlu0 %532
      %vm535 = vcmask 588800
      %v537 = vsel %vm535, %v528, 0
      %vm539 = vcmask 1043456
      %v541 = vsel %vm539, %v525, 0
      %v544 = vsel %vm539, %v526, 0
      %v547 = vsel %vm539, %v527, 0
      %549 = vmatprep.subr.bf16.mxu0 %v514
      %550 = vmatpush1.bf16.msra.mxu0 %v513
      %551 = vmatprep.subr.bf16.mxu0 %v517
      %552 = vmatpush1.bf16.msra.mxu0 %v516
      %553 = vmatprep.subr.bf16.mxu0 %v520
      %554 = vmatpush1.bf16.msra.mxu0 %v519
      %555 = vmatprep.subr.bf16.mxu0 %v523
      %556 = vmatpush1.bf16.msra.mxu0 %v522
      %557 = vmatprep.subr.bf16.mxu0 %v544
      %558 = vmatpush1.bf16.msra.mxu0 %v541
      %559 = vmatprep.subr.bf16.mxu0 0
      %560 = vmatpush1.bf16.msra.mxu0 0
      %561 = vmatprep.subr.bf16.mxu0 0
      %562 = vmatpush1.bf16.msra.mxu0 0
      %563 = vmatprep.subr.bf16.mxu0 0
      %564 = vmatpush1.bf16.msra.mxu0 0
      %565 = vmatprep.subr.bf16.mxu0 0
      %566 = vmatpush1.bf16.msra.mxu0 0
      %567 = vmatprep.subr.bf16.mxu0 0
      %568 = vmatpush1.bf16.msra.mxu0 0
      %569 = vmatprep.subr.bf16.mxu0 0
      %570 = vmatpush1.bf16.msra.mxu0 0
      %571 = vmatprep.subr.bf16.mxu0 0
      %572 = vmatpush1.bf16.msra.mxu0 0
      %573 = vmatprep.subr.bf16.mxu0 0
      %574 = vmatpush1.bf16.msra.mxu0 0
      %575 = vmatprep.subr.bf16.mxu0 0
      %576 = vmatpush1.bf16.msra.mxu0 0
      %577 = vmatprep.subr.bf16.mxu0 0
      %578 = vmatpush1.bf16.msra.mxu0 0
      %579 = vmatprep.subr.bf16.mxu0 0
      %580 = vmatpush1.bf16.msra.mxu0 0
      %581 = vmatprep.mubr.bf16.mxu0 0
      %582 = vmatmul.mubr.bf16.gmra.mrb[0].mxu0 %v537
      %v583 = vpop.f32.mrb[0].mxu0
      %v584 = vadd.f32 %v533, %v583
      %v585 = vpop.f32.mrb[0].mxu0
      %v586 = vadd.f32 %v533, %v585
      %v587 = vpop.f32.mrb[0].mxu0
      %v588 = vpop.f32.mrb[0].mxu0
      %589 = vdwg.mxu0
      %590 = vmatprep.subr.bf16.mxu0 0
      %591 = vmatpush1.bf16.msra.mxu0 %v515
      %592 = vmatprep.subr.bf16.mxu0 0
      %593 = vmatpush1.bf16.msra.mxu0 %v518
      %594 = vmatprep.subr.bf16.mxu0 0
      %595 = vmatpush1.bf16.msra.mxu0 %v521
      %596 = vmatprep.subr.bf16.mxu0 0
      %597 = vmatpush1.bf16.msra.mxu0 %v524
      %598 = vmatprep.subr.bf16.mxu0 0
      %599 = vmatpush1.bf16.msra.mxu0 %v547
      %600 = vmatprep.subr.bf16.mxu0 0
      %601 = vmatpush1.bf16.msra.mxu0 0
      %602 = vmatprep.subr.bf16.mxu0 0
      %603 = vmatpush1.bf16.msra.mxu0 0
      %604 = vmatprep.subr.bf16.mxu0 0
      %605 = vmatpush1.bf16.msra.mxu0 0
      %606 = vmatprep.subr.bf16.mxu0 0
      %607 = vmatpush1.bf16.msra.mxu0 0
      %608 = vmatprep.subr.bf16.mxu0 0
      %609 = vmatpush1.bf16.msra.mxu0 0
      %610 = vmatprep.subr.bf16.mxu0 0
      %611 = vmatpush1.bf16.msra.mxu0 0
      %612 = vmatprep.subr.bf16.mxu0 0
      %613 = vmatpush1.bf16.msra.mxu0 0
      %614 = vmatprep.subr.bf16.mxu0 0
      %615 = vmatpush1.bf16.msra.mxu0 0
      %616 = vmatprep.subr.bf16.mxu0 0
      %617 = vmatpush1.bf16.msra.mxu0 0
      %618 = vmatprep.subr.bf16.mxu0 0
      %619 = vmatpush1.bf16.msra.mxu0 0
      %620 = vmatprep.subr.bf16.mxu0 0
      %621 = vmatpush1.bf16.msra.mxu0 0
      %622 = vmatprep.mubr.bf16.mxu0 0
      %623 = vmatmul.mubr.bf16.gmra.mrb[0].mxu0 %v537
      %v624 = vpop.f32.mrb[0].mxu0
      %v625 = vadd.f32 %v533, %v624
      %v626 = vpop.f32.mrb[0].mxu0
      %v627 = vpop.f32.mrb[0].mxu0
      %v628 = vpop.f32.mrb[0].mxu0
      %629 = vdwg.mxu0
      %v630 = vld [vmem:[%s6] sm:$0x7]
      %v632 = vlaneseq
      %v633 = vshrl.u32 %v632, 7
      %v634 = vsub.s32 0, %v633
      %v635 = vrot.slane %v630, %v634
      %v636 = vlaneseq
      %v637 = vshrl.u32 %v636, 7
      %v638 = vsub.s32 1, %v637
      %v639 = vrot.slane %v630, %v638
      %v640 = vlaneseq
      %v641 = vshrl.u32 %v640, 7
      %v642 = vsub.s32 2, %v641
      %v643 = vrot.slane %v630, %v642
      %v647 = vmul.f32 %v584, %v635
      %v648 = vmul.f32 %v586, %v639
      %v649 = vmul.f32 %v625, %v643
      %v650 = vpack.c.bf16 %v647, %v647
      %v651 = vpack.c.bf16 %v648, %v648
      %v652 = vpack.c.bf16 %v649, %v649
      %v656 = vunpack.c.l.b16 %v650
      %v657 = vunpack.c.l.b16 %v651
      %v658 = vunpack.c.l.b16 %v652
      %v659 = vpack.c.b16 %v657, %v656
      %v660 = vpack.c.b16 %v658, %v658
      %663 = vst [vmem:[%s312] sm:$0xff] %v659
      %vm664 = vcmask 257024
      %665 = vst.msk [vmem:[%s312 + $0x8] sm:$0xf] %vm664, %v660
      %v666 = vadd.f32 %v647, %v648
      %vm667 = vcmask 261120
      %v668 = vsel %vm667, %v649, 0.0
      %v669 = vadd.f32 %v666, %v668
      %670 = vadd.xlane.f32.xlu0 %v669
      %v671 = vpop.xlane.xlu0 %670
      %v672 = vmul.f32 %v647, %v647
      %v673 = vmul.f32 %v648, %v648
      %v674 = vmul.f32 %v649, %v649
      %v675 = vadd.f32 %v672, %v673
      %v676 = vsel %vm667, %v674, 0.0
      %v677 = vadd.f32 %v675, %v676
      %678 = vadd.xlane.f32.xlu0 %v677
      %v679 = vpop.xlane.xlu0 %678
      %vm680 = vcmask 7168
      %v681 = vsel %vm680, %v671, %v679
      %682 = vst.msk [vmem:[%s316] sm:$0xff] %vm320, %v681
      %p683 = scmp.lt.s32.totalorder %s20, 1
      %s684 = scalar_select %p683, %s20, 1
      %s685 = smul.addr %s684, 3
      %s686 = smul.addr %s685, 4
      %s687 = scalar_lea.vmem %s7, %s686
      %p688 = scmp.lt.s32.totalorder %s20, 1
      %s689 = scalar_select %p688, %s20, 1
      %s690 = smul.addr %s689, 8
      %s691 = scalar_lea.vmem %s8, %s690
      // Predicated region
      $region49: #{up_forward.4} parent=47 // pred_check
        %p692 = pneg %p190
      $region50: #{up_forward.4} parent=47 // pred_check_branch
        %694 = sbr.rel (%p692) target = $region52
      $region51: #{up_forward.4} parent=47 // pred_region
        _
      $region52: #{up_forward.4} parent=47 // pred_fallthru
        _
      // Predicated region
      $region53: #{up_forward.4} parent=47 // pred_check
        %p695 = pneg %p216
      $region54: #{up_forward.4} parent=47 // pred_check_branch
        %697 = sbr.rel (%p695) target = $region56
      $region55: #{up_forward.4} parent=47 // pred_region
        _
      $region56: #{up_forward.4} parent=47 // pred_fallthru
        _
    $region48: #{up_forward.4} parent=5 // pred_fallthru
      _
    %p698 = scmp.le.s32.totalorder 2, %s15
    // Predicated region
    $region57: #{up_forward.4} parent=5 // pred_check
      %p699 = pneg %p698
    $region58: #{up_forward.4} parent=5 // pred_check_branch
      %701 = sbr.rel (%p699) target = $region60
    $region59: #{up_forward.4} parent=5 // pred_region
      %s702 = ssub.s32 %s15, 2
      // Predicated region
      $region61: #{up_forward.4} parent=59 // pred_check
        %p703 = pneg %p196
      $region62: #{up_forward.4} parent=59 // pred_check_branch
        %705 = sbr.rel (%p703) target = $region64
      $region63: #{up_forward.4} parent=59 // pred_region
        %p706 = scmp.lt.s32.totalorder %s21, 1
        %s707 = scalar_select %p706, %s21, 1
        %s708 = smul.addr %s707, 3
        %s709 = smul.addr %s708, 4
        %s710 = scalar_lea.vmem %s7, %s709
      $region64: #{up_forward.4} parent=59 // pred_fallthru
        _
      // Predicated region
      $region65: #{up_forward.4} parent=59 // pred_check
        %p711 = pneg %p222
      $region66: #{up_forward.4} parent=59 // pred_check_branch
        %713 = sbr.rel (%p711) target = $region68
      $region67: #{up_forward.4} parent=59 // pred_region
        %p714 = scmp.lt.s32.totalorder %s21, 1
        %s715 = scalar_select %p714, %s21, 1
        %s716 = smul.addr %s715, 8
        %s717 = scalar_lea.vmem %s8, %s716
      $region68: #{up_forward.4} parent=59 // pred_fallthru
        _
    $region60: #{up_forward.4} parent=5 // pred_fallthru
      _
  $region6: #{up_forward.4} parent=0 // loop_footer
    %s19 = sadd.s32 1, %s15
  $region7: #{up_forward.4} parent=0 // loop_footer_branch
    %14 = sbr.rel target = $region3
  $region8: #{up_forward.4} parent=0 // loop_exit
    _

</llo_original>
